<compile_context>
chip_gen: v7x
topology: tpu7x:2x2x1
jax: 0.10.0
libtpu: 0.0.40
codegen_flags: <defaults>
</compile_context>

<pallas_src>
import functools
import math

import jax
import jax.numpy as jnp
from jax.experimental import pallas as pl
from jax.experimental.pallas import tpu as pltpu

# Max row tile in *packed* rows (each packed row = FOLD original rows).
_TM_PACKED = 1024
# Budget for the kron-packed resident weights (leave headroom under the 32 MiB
# scoped VMEM limit / v7x's 64 MiB physical VMEM).
_RESIDENT_VMEM_BUDGET = 20 * 1024 * 1024


def _decoder_kernel(z_ref, wa_ref, ainv_ref, w1_ref, b1_ref, w2_ref, b2_ref,
                    matz_ref, out_ref):
    """One row-tile of the decoder in the lane-packed (kron block-diagonal)
    layout.

    z_ref    : (TM, Pz)  packed input_z rows (streamed per grid step), f32
    wa_ref   : (1, Pz)   tiled Wa, f32
    ainv_ref : (Pz, Pz)  kron(I, inv(I - A^T)), f32 (mat_z precision)
    w1_ref   : (Pz, Ph)  kron(I, inv(I - A^T) @ W1^T), bf16 or f32
    b1_ref   : (1, Ph)   tiled (b1 - Wa @ W1^T), f32
    w2_ref   : (Ph, Po)  kron(I, W2^T), bf16 or f32
    b2_ref   : (1, Po)   tiled b2, f32
    matz_ref : (TM, Pz)  packed mat_z output, f32
    out_ref  : (TM, Po)  packed out output, f32
    """
    zw = z_ref[...] + wa_ref[...]                                  # (TM, Pz)

    # mat_z = (z + Wa) @ inv(I - A^T) - Wa   (f32: returned output)
    mat_z = jnp.dot(zw, ainv_ref[...],
                    preferred_element_type=jnp.float32) - wa_ref[...]
    matz_ref[...] = mat_z.astype(matz_ref.dtype)

    # Fused fc1: relu((z + Wa) @ (Ainv @ W1^T) + (b1 - Wa @ W1^T)).
    # Consuming zw (not mat_z) removes the serial dependency on the ainv dot.
    zw_c = zw.astype(w1_ref.dtype)
    h3 = jnp.maximum(
        jnp.dot(zw_c, w1_ref[...], preferred_element_type=jnp.float32)
        + b1_ref[...], 0.0)

    # out = fc2(H3)
    out_ref[...] = (jnp.dot(h3.astype(w2_ref.dtype), w2_ref[...],
                            preferred_element_type=jnp.float32)
                    + b2_ref[...]).astype(out_ref.dtype)


def _target_lanes():
    """MXU-width target for the lane fold: 256 on v6e/v7x, 128 otherwise."""
    try:
        kind = jax.devices()[0].device_kind.lower()
    except Exception:
        return 128
    return 256 if ("v6" in kind or "v7" in kind) else 128


def _choose_fold(dz, h, o, target_lanes, budget_bytes=_RESIDENT_VMEM_BUDGET):
    """Rows folded into the lane axis: fold*dz and fold*o hit `target_lanes`
    lanes; if the kron-packed residents would exceed the VMEM budget, halve
    the fold (stay lane-dense as long as possible) instead of cliffing to 1."""
    def need(dim, lanes):
        return lanes // math.gcd(lanes, dim)

    na, no = need(dz, target_lanes), need(o, target_lanes)
    fold = na * no // math.gcd(na, no)                             # lcm

    def resident_bytes(f):                                         # f32 upper bound
        pz, ph, po = f * dz, f * h, f * o
        return 4 * (pz * pz + pz * ph + ph * po + pz + ph + po)

    while fold > 1 and resident_bytes(fold) > budget_bytes:
        fold //= 2
    return max(fold, 1)


def _choose_tm(m_packed, tm_packed):
    """Row tile (packed rows): cap at tm_packed, but when M is large enough
    guarantee >= 4 grid steps (8-row aligned) so double-buffering and v7x's
    second TensorCore actually engage."""
    tm = max(1, min(tm_packed, m_packed))
    if m_packed >= 32:
        quarter = -(-m_packed // 4)              # cdiv(m_packed, 4)
        quarter = -(-quarter // 8) * 8           # round up to sublane multiple
        tm = min(tm, max(8, quarter))
    return tm


@functools.partial(jax.jit, static_argnames=("tm_packed", "mxu_bf16"))
def daggnn_mlp_decoder(input_z, origin_A, Wa, W1, b1, W2, b2, adj_A_tilt,
                       tm_packed=_TM_PACKED, mxu_bf16=True):
    """Adjacency preprocessing, lane packing, gridded Pallas kernel, unpack."""
    B, d, Dz = input_z.shape
    assert Dz == origin_A.shape[0] == origin_A.shape[1], (
        "matmul(input_z + Wa, adj_A_new1) requires n_in_z == data_variable_size")
    H = W1.shape[0]
    O = W2.shape[0]
    f32 = jnp.float32
    wdt = jnp.bfloat16 if mxu_bf16 else f32      # MXU operand dtype for fc1/fc2

    # preprocess_adj_new1: inv(I - A^T).
    # TODO(synk): matrix inverse has no Pallas equivalent; small (d,d) linalg
    # stays in XLA glue (same jit program).
    adj_A_new1 = jnp.linalg.inv(jnp.eye(Dz, dtype=f32) - origin_A.T.astype(f32))

    # Fused fc1 weight/bias (mat_z @ W1^T == (z+Wa) @ (Ainv @ W1^T) - Wa @ W1^T)
    w1t = W1.T.astype(f32)                                   # (Dz, H)
    W1f = adj_A_new1 @ w1t                                   # (Dz, H)
    b1f = b1.astype(f32) - Wa.astype(f32) @ w1t              # (H,)

    # ---- lane packing: fold rows into the lane axis, kron-pack weights ------
    fold = _choose_fold(Dz, H, O, _target_lanes())
    Pz, Ph, Po = fold * Dz, fold * H, fold * O

    eye_f = jnp.eye(fold, dtype=f32)
    ainv_p = jnp.kron(eye_f, adj_A_new1)                     # (Pz, Pz) f32
    w1_p = jnp.kron(eye_f, W1f).astype(wdt)                  # (Pz, Ph)
    w2_p = jnp.kron(eye_f, W2.T.astype(f32)).astype(wdt)     # (Ph, Po)
    wa_p = jnp.tile(Wa.astype(f32), fold).reshape(1, Pz)
    b1_p = jnp.tile(b1f, fold).reshape(1, Ph)
    b2_p = jnp.tile(b2.astype(f32), fold).reshape(1, Po)

    # ---- single pad covering fold- and grid-alignment ------------------------
    M = B * d
    m_packed = pl.cdiv(M, fold)
    tm = _choose_tm(m_packed, tm_packed)
    grid_m = pl.cdiv(m_packed, tm)
    total_packed = grid_m * tm
    total_rows = total_packed * fold

    z_flat = input_z.astype(f32).reshape(M, Dz)
    if total_rows != M:
        z_flat = jnp.pad(z_flat, ((0, total_rows - M), (0, 0)))
    z_packed = z_flat.reshape(total_packed, Pz)               # free row-major view

    # ---- specs ----------------------------------------------------------------
    row_spec_z = pl.BlockSpec((tm, Pz), lambda i: (i, 0))     # streamed rows
    row_spec_o = pl.BlockSpec((tm, Po), lambda i: (i, 0))

    def resident(shape, single_buffered):
        idx = lambda i: (0, 0)                                # stays in VMEM
        if single_buffered:
            try:
                return pl.BlockSpec(shape, idx, pipeline_mode=pl.Buffered(1))
            except TypeError:                                 # older BlockSpec API
                pass
        return pl.BlockSpec(shape, idx)

    def run(single_buffered):
        return pl.pallas_call(
            _decoder_kernel,
            out_shape=(
                jax.ShapeDtypeStruct((total_packed, Pz), f32),
                jax.ShapeDtypeStruct((total_packed, Po), f32),
            ),
            grid=(grid_m,),
            in_specs=[
                row_spec_z,                              # z (per-tile DMA stream)
                resident((1, Pz), single_buffered),      # Wa (tiled)
                resident((Pz, Pz), single_buffered),     # inv(I - A^T), kron-packed
                resident((Pz, Ph), single_buffered),     # Ainv @ W1^T, kron-packed
                resident((1, Ph), single_buffered),      # b1 - Wa @ W1^T (tiled)
                resident((Ph, Po), single_buffered),     # W2^T, kron-packed
                resident((1, Po), single_buffered),      # b2 (tiled)
            ],
            out_specs=(row_spec_z, row_spec_o),
            compiler_params=pltpu.CompilerParams(
                dimension_semantics=("parallel",),       # shard M tiles across TCs
                vmem_limit_bytes=32 * 1024 * 1024,
            ),
        )(z_packed, wa_p, ainv_p, w1_p, b1_p, w2_p, b2_p)

    try:
        mat_z_p, out_p = run(True)
    except Exception:
        # Fallback if single-buffered residents are rejected by this jax build.
        mat_z_p, out_p = run(False)

    # ---- unpack (row-major views, free at the XLA level) ----------------------
    mat_z = mat_z_p.reshape(total_rows, Dz)[:M].reshape(B, d, Dz)
    out = out_p.reshape(total_rows, O)[:M].reshape(B, d, O)
    return mat_z, out, adj_A_tilt


def _reference(input_z, origin_A, Wa, W1, b1, W2, b2):
    """Pure-JAX f32 reference of the PyTorch forward."""
    d = origin_A.shape[0]
    adj_A_new1 = jnp.linalg.inv(jnp.eye(d, dtype=jnp.float32) - origin_A.T)
    mat_z = jnp.matmul(input_z + Wa, adj_A_new1) - Wa
    H3 = jax.nn.relu(jnp.einsum("bdi,hi->bdh", mat_z, W1) + b1)
    out = jnp.einsum("bdh,oh->bdo", H3, W2) + b2
    return mat_z, out


def _xavier_normal(key, fan_out, fan_in):
    std = jnp.sqrt(2.0 / (fan_in + fan_out))
    return std * jax.random.normal(key, (fan_out, fan_in), dtype=jnp.float32)


if __name__ == "__main__":
    # Small shapes consistent with the module.
    batch = 2
    data_variable_size = 8
    n_in_z = data_variable_size   # required by matmul(input_z + Wa, adj_A_new1)
    n_hid = 32
    n_out = 8

    key = jax.random.PRNGKey(0)
    k_z, k_A, k_wa, k_w1, k_w2, k_tilt = jax.random.split(key, 6)

    # Module parameters (xavier_normal_ weights, zero biases).
    W1 = _xavier_normal(k_w1, n_hid, n_in_z)          # out_fc1.weight (n_hid, n_in_z)
    b1 = jnp.zeros((n_hid,), dtype=jnp.float32)       # out_fc1.bias
    W2 = _xavier_normal(k_w2, n_out, n_hid)           # out_fc2.weight (n_out, n_hid)
    b2 = jnp.zeros((n_out,), dtype=jnp.float32)       # out_fc2.bias

    # Forward inputs.
    input_z = jax.random.normal(k_z, (batch, data_variable_size, n_in_z),
                                dtype=jnp.float32)
    origin_A = 0.1 * jax.random.normal(k_A, (data_variable_size,
                                             data_variable_size),
                                       dtype=jnp.float32)
    Wa = 0.1 * jax.random.normal(k_wa, (n_in_z,), dtype=jnp.float32)
    adj_A_tilt = jax.random.normal(k_tilt, (data_variable_size,
                                            data_variable_size),
                                   dtype=jnp.float32)

    ref_mat_z, ref_out = _reference(input_z, origin_A, Wa, W1, b1, W2, b2)

    # 1) Exactness check: f32 MXU operands (validates kron packing + fc1 fusion).
    mat_z, out, tilt = daggnn_mlp_decoder(
        input_z, origin_A, Wa, W1, b1, W2, b2, adj_A_tilt, mxu_bf16=False)
    jax.block_until_ready((mat_z, out, tilt))
    assert jnp.allclose(mat_z, ref_mat_z, atol=1e-4, rtol=1e-4)
    assert jnp.allclose(out, ref_out, atol=1e-4, rtol=1e-4)
    assert jnp.array_equal(tilt, adj_A_tilt)

    # 2) Default fast path: bf16 fc1/fc2 operands (looser tolerance for out;
    #    mat_z stays f32-accurate since the ainv dot is kept in f32).
    mat_z_b, out_b, _ = daggnn_mlp_decoder(
        input_z, origin_A, Wa, W1, b1, W2, b2, adj_A_tilt)
    jax.block_until_ready((mat_z_b, out_b))
    assert jnp.allclose(mat_z_b, ref_mat_z, atol=1e-4, rtol=1e-4)
    assert jnp.allclose(out_b, ref_out, atol=5e-2, rtol=5e-2)

    # 3) Gridded / padded path: larger batch + small row-tile override so both
    #    fold- and grid-padding and multiple grid steps are exercised.
    big_batch = 127
    input_z2 = jax.random.normal(jax.random.PRNGKey(1),
                                 (big_batch, data_variable_size, n_in_z),
                                 dtype=jnp.float32)
    mat_z2, out2, _ = daggnn_mlp_decoder(
        input_z2, origin_A, Wa, W1, b1, W2, b2, adj_A_tilt, tm_packed=8)
    jax.block_until_ready((mat_z2, out2))
    ref_mat_z2, ref_out2 = _reference(input_z2, origin_A, Wa, W1, b1, W2, b2)
    assert jnp.allclose(mat_z2, ref_mat_z2, atol=1e-4, rtol=1e-4)
    assert jnp.allclose(out2, ref_out2, atol=5e-2, rtol=5e-2)

    print("KERNEL_OK")
</pallas_src>

<mosaic_0001>
module attributes {stable_mosaic.version = 11 : i64} {
  func.func @_decoder_kernel(%arg0: i32, %arg1: memref<1x128xf32, #tpu.memory_space<vmem>>, %arg2: memref<1x128xf32, #tpu.memory_space<vmem>>, %arg3: memref<128x128xf32, #tpu.memory_space<vmem>>, %arg4: memref<128x512xf32, #tpu.memory_space<vmem>>, %arg5: memref<1x512xf32, #tpu.memory_space<vmem>>, %arg6: memref<512x128xf32, #tpu.memory_space<vmem>>, %arg7: memref<1x128xf32, #tpu.memory_space<vmem>>, %arg8: memref<1x128xf32, #tpu.memory_space<vmem>>, %arg9: memref<1x128xf32, #tpu.memory_space<vmem>>) attributes {dimension_semantics = [#tpu.dimension_semantics<parallel>], iteration_bounds = array<i64: 1>, scalar_prefetch = 0 : i64, scratch_operands = 0 : i64, tpu.core_type = #tpu.core_type<tc>, window_params = [{transform_indices = @transform_0, window_bounds = array<i64: 1, 128>}, {pipeline_mode = #tpu.pipeline_mode<synchronous>, transform_indices = @transform_1, window_bounds = array<i64: 1, 128>}, {pipeline_mode = #tpu.pipeline_mode<synchronous>, transform_indices = @transform_2, window_bounds = array<i64: 128, 128>}, {pipeline_mode = #tpu.pipeline_mode<synchronous>, transform_indices = @transform_3, window_bounds = array<i64: 128, 512>}, {pipeline_mode = #tpu.pipeline_mode<synchronous>, transform_indices = @transform_4, window_bounds = array<i64: 1, 512>}, {pipeline_mode = #tpu.pipeline_mode<synchronous>, transform_indices = @transform_5, window_bounds = array<i64: 512, 128>}, {pipeline_mode = #tpu.pipeline_mode<synchronous>, transform_indices = @transform_6, window_bounds = array<i64: 1, 128>}, {transform_indices = @transform_7, window_bounds = array<i64: 1, 128>}, {transform_indices = @transform_8, window_bounds = array<i64: 1, 128>}]} {
    %c0 = arith.constant 0 : index
    %c0_0 = arith.constant 0 : index
    %0 = vector.load %arg1[%c0, %c0_0] : memref<1x128xf32, #tpu.memory_space<vmem>>, vector<1x128xf32>
    %c0_1 = arith.constant 0 : index
    %c0_2 = arith.constant 0 : index
    %1 = vector.load %arg2[%c0_1, %c0_2] : memref<1x128xf32, #tpu.memory_space<vmem>>, vector<1x128xf32>
    %2 = arith.addf %0, %1 : vector<1x128xf32>
    %c0_3 = arith.constant 0 : index
    %c0_4 = arith.constant 0 : index
    %3 = vector.load %arg3[%c0_3, %c0_4] : memref<128x128xf32, #tpu.memory_space<vmem>>, vector<128x128xf32>
    %cst = arith.constant dense<0.000000e+00> : vector<1x128xf32>
    %4 = tpu.matmul %2, %3, %cst {dimension_numbers = #tpu.dot_dimension_numbers<[1], [0], [0], [1], [0, 0, 1, 1], [], []>} : vector<1x128xf32>, vector<128x128xf32>, vector<1x128xf32> -> vector<1x128xf32>
    %c0_5 = arith.constant 0 : index
    %c0_6 = arith.constant 0 : index
    %5 = vector.load %arg2[%c0_5, %c0_6] : memref<1x128xf32, #tpu.memory_space<vmem>>, vector<1x128xf32>
    %6 = arith.subf %4, %5 : vector<1x128xf32>
    %c0_7 = arith.constant 0 : index
    %c0_8 = arith.constant 0 : index
    %7 = vector.load %arg8[%c0_7, %c0_8] : memref<1x128xf32, #tpu.memory_space<vmem>>, vector<1x128xf32>
    tpu.vector_store %arg8[%c0_7, %c0_8], %6 {strides = array<i32>} : memref<1x128xf32, #tpu.memory_space<vmem>>, vector<1x128xf32>,
    %c0_9 = arith.constant 0 : index
    %c0_10 = arith.constant 0 : index
    %8 = vector.load %arg4[%c0_9, %c0_10] : memref<128x512xf32, #tpu.memory_space<vmem>>, vector<128x512xf32>
    %cst_11 = arith.constant dense<0.000000e+00> : vector<1x512xf32>
    %9 = tpu.matmul %2, %8, %cst_11 {dimension_numbers = #tpu.dot_dimension_numbers<[1], [0], [0], [1], [0, 0, 1, 1], [], []>} : vector<1x128xf32>, vector<128x512xf32>, vector<1x512xf32> -> vector<1x512xf32>
    %c0_12 = arith.constant 0 : index
    %c0_13 = arith.constant 0 : index
    %10 = vector.load %arg5[%c0_12, %c0_13] : memref<1x512xf32, #tpu.memory_space<vmem>>, vector<1x512xf32>
    %11 = arith.addf %9, %10 : vector<1x512xf32>
    %cst_14 = arith.constant 0.000000e+00 : f32
    %12 = vector.broadcast %cst_14 : f32 to vector<1x512xf32>
    %13 = arith.maximumf %11, %12 : vector<1x512xf32>
    %c0_15 = arith.constant 0 : index
    %c0_16 = arith.constant 0 : index
    %14 = vector.load %arg6[%c0_15, %c0_16] : memref<512x128xf32, #tpu.memory_space<vmem>>, vector<512x128xf32>
    %cst_17 = arith.constant dense<0.000000e+00> : vector<1x128xf32>
    %15 = tpu.matmul %13, %14, %cst_17 {dimension_numbers = #tpu.dot_dimension_numbers<[1], [0], [0], [1], [0, 0, 1, 1], [], []>} : vector<1x512xf32>, vector<512x128xf32>, vector<1x128xf32> -> vector<1x128xf32>
    %c0_18 = arith.constant 0 : index
    %c0_19 = arith.constant 0 : index
    %16 = vector.load %arg7[%c0_18, %c0_19] : memref<1x128xf32, #tpu.memory_space<vmem>>, vector<1x128xf32>
    %17 = arith.addf %15, %16 : vector<1x128xf32>
    %c0_20 = arith.constant 0 : index
    %c0_21 = arith.constant 0 : index
    %18 = vector.load %arg9[%c0_20, %c0_21] : memref<1x128xf32, #tpu.memory_space<vmem>>, vector<1x128xf32>
    tpu.vector_store %arg9[%c0_20, %c0_21], %17 {strides = array<i32>} : memref<1x128xf32, #tpu.memory_space<vmem>>, vector<1x128xf32>,
    return
  }
  func.func @transform_0(%arg0: i32) -> (i32, i32) {
    %c0_i32 = arith.constant 0 : i32
    %c0_i32_0 = arith.constant 0 : i32
    return %arg0, %c0_i32 : i32, i32
  }
  func.func @transform_1(%arg0: i32) -> (i32, i32) {
    %c0_i32 = arith.constant 0 : i32
    %c0_i32_0 = arith.constant 0 : i32
    %c0_i32_1 = arith.constant 0 : i32
    return %c0_i32, %c0_i32_0 : i32, i32
  }
  func.func @transform_2(%arg0: i32) -> (i32, i32) {
    %c0_i32 = arith.constant 0 : i32
    %c0_i32_0 = arith.constant 0 : i32
    %c0_i32_1 = arith.constant 0 : i32
    return %c0_i32, %c0_i32_0 : i32, i32
  }
  func.func @transform_3(%arg0: i32) -> (i32, i32) {
    %c0_i32 = arith.constant 0 : i32
    %c0_i32_0 = arith.constant 0 : i32
    %c0_i32_1 = arith.constant 0 : i32
    return %c0_i32, %c0_i32_0 : i32, i32
  }
  func.func @transform_4(%arg0: i32) -> (i32, i32) {
    %c0_i32 = arith.constant 0 : i32
    %c0_i32_0 = arith.constant 0 : i32
    %c0_i32_1 = arith.constant 0 : i32
    return %c0_i32, %c0_i32_0 : i32, i32
  }
  func.func @transform_5(%arg0: i32) -> (i32, i32) {
    %c0_i32 = arith.constant 0 : i32
    %c0_i32_0 = arith.constant 0 : i32
    %c0_i32_1 = arith.constant 0 : i32
    return %c0_i32, %c0_i32_0 : i32, i32
  }
  func.func @transform_6(%arg0: i32) -> (i32, i32) {
    %c0_i32 = arith.constant 0 : i32
    %c0_i32_0 = arith.constant 0 : i32
    %c0_i32_1 = arith.constant 0 : i32
    return %c0_i32, %c0_i32_0 : i32, i32
  }
  func.func @transform_7(%arg0: i32) -> (i32, i32) {
    %c0_i32 = arith.constant 0 : i32
    %c0_i32_0 = arith.constant 0 : i32
    return %arg0, %c0_i32 : i32, i32
  }
  func.func @transform_8(%arg0: i32) -> (i32, i32) {
    %c0_i32 = arith.constant 0 : i32
    %c0_i32_0 = arith.constant 0 : i32
    return %arg0, %c0_i32 : i32, i32
  }
}

</mosaic_0001>

<llo_original>
// kernel: custom-call.11
$region0: #{custom-call.11}
  %s0 = inlined_call_operand.vmem [shape: f32[8,8], index: 0, kind: input, shape index: {}]
  %s1 = inlined_call_operand.vmem [shape: f32[8,8], index: 1, kind: output, shape index: {0}]
  %s2 = inlined_call_operand.hbm [shape: s32[8], index: 2, kind: output, shape index: {1}]
  %s3 = inlined_call_operand.vmem [shape: s32[8], index: 3, kind: output, shape index: {2}]
  %4 = xla_tuple %s1, %s2, %s3
  $region1: #{custom-call.11} parent=0
    #allocation0 [shape = 'u8[4096]{0}', space=vmem, size = 0x1000, scoped, tag = 'operand span for operand 0']
    #allocation1 [shape = 'u8[4096]{0}', space=vmem, size = 0x1000, scoped, tag = 'operand span for operand 1']
    #allocation2 [shape = 'u8[4096]{0}', space=vmem, size = 0x1000, scoped, tag = 'operand span for operand 2']
    #allocation3 [shape = 'u8[512]{0}', space=vmem, size = 0x400, scoped, tag = 'packed  for operand 2']
    #allocation4 [shape = 's32[1]{0}', space=sflag, size = 0x4, scoped, tag = 'scoped memory for custom-call.11']
    #allocation5 [shape = 'u8[4096]{0}', space=vmem, size = 0x1000, scoped, tag = 'operand span for operand 3']
    #allocation6 [shape = 'u8[512]{0}', space=vmem, size = 0x400, scoped, tag = 'packed  for operand 3']
    #allocation7 [shape = 's32[8,128]{1,0}', space=vmem, size = 0x1000, scoped, tag = 'scratch for permutations']
    %5 = vsyncpa [#allocation4], 0
    %p7 = scmp.gt.s32.totalorder 8, 0
    // Predicated region
    $region2: #{custom-call.11} parent=1 // pred_check
      %p8 = pneg %p7
    $region3: #{custom-call.11} parent=1 // pred_check_branch
      %10 = sbr.rel (%p8) target = $region5
    $region4: #{custom-call.11} parent=1 // pred_region
      %s11 = sshra.s32 8, 3
      %p12 = scmp.gt.s32.totalorder %s11, 0
      // Predicated region
      $region6: #{custom-call.11} parent=4 // pred_check
        %p13 = pneg %p12
      $region7: #{custom-call.11} parent=4 // pred_check_branch
        %15 = sbr.rel (%p13) target = $region9
      $region8: #{custom-call.11} parent=4 // pred_region
        %s16 = ssub.s32 %s11, 1
        %s17 = smul.u32 %s16, 128
        %s18 = sshra.s32 %s17, 4
        %s19 = scalar_lea.vmem %s0, %s18
        %v20 = vld [vmem:[%s0] sm:$0xff]
        // While loop
        $region10: #{custom-call.11} parent=8 // loop_pre_header
          _
        $region11: #{custom-call.11} parent=8 // loop_header
          %s21 = sphi %s0, %s43
          %s22 = sphi [#allocation0], %s44
          %v23 = vphi %v20, %v45
          %s24 = ssub.s32 %s19, 64
          %p25 = scmp.gt.s32.totalorder %s21, %s24
        $region12: #{custom-call.11} parent=8 // loop_header_branch
          %27 = sbr.rel (%p25) target = $region16
        $region13: #{custom-call.11} parent=8 // loop_body
          %28 = vst [vmem:[%s22] sm:$0xff] %v23
          %v29 = vld [vmem:[%s21 + $0x8] sm:$0xff]
          %30 = vst [vmem:[%s22 + $0x8] sm:$0xff] %v29
          %v31 = vld [vmem:[%s21 + $0x10] sm:$0xff]
          %32 = vst [vmem:[%s22 + $0x10] sm:$0xff] %v31
          %v33 = vld [vmem:[%s21 + $0x18] sm:$0xff]
          %34 = vst [vmem:[%s22 + $0x18] sm:$0xff] %v33
          %v35 = vld [vmem:[%s21 + $0x20] sm:$0xff]
          %36 = vst [vmem:[%s22 + $0x20] sm:$0xff] %v35
          %v37 = vld [vmem:[%s21 + $0x28] sm:$0xff]
          %38 = vst [vmem:[%s22 + $0x28] sm:$0xff] %v37
          %v39 = vld [vmem:[%s21 + $0x30] sm:$0xff]
          %40 = vst [vmem:[%s22 + $0x30] sm:$0xff] %v39
          %v41 = vld [vmem:[%s21 + $0x38] sm:$0xff]
          %42 = vst [vmem:[%s22 + $0x38] sm:$0xff] %v41
        $region14: #{custom-call.11} parent=8 // loop_footer
          %s43 = scalar_lea.vmem %s21, 64
          %s44 = scalar_lea.vmem %s22, 64
          %v45 = vld [vmem:[%s21 + $0x40] sm:$0xff]
        $region15: #{custom-call.11} parent=8 // loop_footer_branch
          %46 = sbr.rel target = $region11
        $region16: #{custom-call.11} parent=8 // loop_exit
          _
        // While loop
        $region17: #{custom-call.11} parent=8 // loop_pre_header
          _
        $region18: #{custom-call.11} parent=8 // loop_header
          %s47 = sphi %s21, %s55
          %s48 = sphi %s22, %s56
          %v49 = vphi %v23, %v49
          %p50 = scmp.gt.s32.totalorder %s47, %s19
        $region19: #{custom-call.11} parent=8 // loop_header_branch
          %52 = sbr.rel (%p50) target = $region23
        $region20: #{custom-call.11} parent=8 // loop_body
          %v53 = vld [vmem:[%s47] sm:$0xff]
          %54 = vst [vmem:[%s48] sm:$0xff] %v53
        $region21: #{custom-call.11} parent=8 // loop_footer
          %s55 = scalar_lea.vmem %s47, 8
          %s56 = scalar_lea.vmem %s48, 8
        $region22: #{custom-call.11} parent=8 // loop_footer_branch
          %57 = sbr.rel target = $region18
        $region23: #{custom-call.11} parent=8 // loop_exit
          _
      $region9: #{custom-call.11} parent=4 // pred_fallthru
        _
      %s58 = sand.u32 8, 7
      %s59 = sshllo.u32 0, %s58
      %s60 = smul.u32 %s11, 128
      %s61 = sshra.s32 %s60, 4
      %s62 = scalar_lea.vmem [#allocation0], %s61
      %s63 = smul.u32 %s11, 128
      %s64 = sshra.s32 %s63, 4
      %s65 = scalar_lea.vmem %s0, %s64
      %v66 = vld [vmem:[%s65] sm:%s59]
      %67 = vst [vmem:[%s62] sm:%s59] %v66
    $region5: #{custom-call.11} parent=1 // pred_fallthru
      _
    %v68 = vld [vmem:[#allocation0] sm:$0xff]
    %69 = vst [vmem:[#allocation1] sm:$0xff] %v68
    %70 = vst [vmem:[#allocation2] sm:$0x1] 0
    %v71 = vlaneseq
    %v72 = vshrl.u32 %v71, 7
    %v73 = vmov %v72
    %75 = vst [vmem:[#allocation7] sm:$0xff] %v73
    loop: start=0, step=1, limit=8
    $region25: #{custom-call.11} parent=1 // loop_pre_header
      _
    $region26: #{custom-call.11} parent=1 // loop_header
      %s77 = sphi 0, %s81
      %p78 = scmp.ge.s32.totalorder %s77, 8
    $region27: #{custom-call.11} parent=1 // loop_header_branch
      %80 = sbr.rel (%p78) target = $region31
    $region28: #{custom-call.11} parent=1 // loop_body
      %v82 = vstv %s77
      %v83 = vlaneseq
      %v84 = vshrl.u32 %v83, 7
      %v85 = vmov %v84
      %v86 = vld [vmem:[#allocation1] sm:$0xff]
      %v87 = vand.u32 2147483647, %v86
      %v89 = vstv %s77
      %vm90 = vcmp.ge.s32.totalorder %v85, %v89
      %vm91 = vcmp.lt.s32.totalorder %v85, 8
      %vm92 = vmand %vm90, %vm91
      %vm93 = vcmp.lt.f32.partialorder -inf, %v87
      %vm94 = vmand %vm92, %vm93
      %v95 = vsel %vm94, %v85, %v82
      %v96 = vsel %vm94, %v87, -inf
      %v97 = vrot.slane %v96, 1
      %v98 = vrot.slane %v95, 1
      %vm99 = vcmp.ge.f32.partialorder %v97, %v96
      %v100 = vsel %vm99, %v97, %v96
      %v101 = vsel %vm99, %v98, %v95
      %v102 = vrot.slane %v97, 1
      %v103 = vrot.slane %v98, 1
      %vm104 = vcmp.ge.f32.partialorder %v102, %v100
      %v105 = vsel %vm104, %v102, %v100
      %v106 = vsel %vm104, %v103, %v101
      %v107 = vrot.slane %v102, 1
      %v108 = vrot.slane %v103, 1
      %vm109 = vcmp.ge.f32.partialorder %v107, %v105
      %v110 = vsel %vm109, %v107, %v105
      %v111 = vsel %vm109, %v108, %v106
      %v112 = vrot.slane %v107, 1
      %v113 = vrot.slane %v108, 1
      %vm114 = vcmp.ge.f32.partialorder %v112, %v110
      %v115 = vsel %vm114, %v112, %v110
      %v116 = vsel %vm114, %v113, %v111
      %v117 = vrot.slane %v112, 1
      %v118 = vrot.slane %v113, 1
      %vm119 = vcmp.ge.f32.partialorder %v117, %v115
      %v120 = vsel %vm119, %v117, %v115
      %v121 = vsel %vm119, %v118, %v116
      %v122 = vrot.slane %v117, 1
      %v123 = vrot.slane %v118, 1
      %vm124 = vcmp.ge.f32.partialorder %v122, %v120
      %v125 = vsel %vm124, %v122, %v120
      %v126 = vsel %vm124, %v123, %v121
      %v127 = vrot.slane %v122, 1
      %v128 = vrot.slane %v123, 1
      %vm129 = vcmp.ge.f32.partialorder %v127, %v125
      %v130 = vsel %vm129, %v127, %v125
      %v131 = vsel %vm129, %v128, %v126
      %s132 = ssub.s32 128, %s77
      %133 = vrot.lane.b32.xlu0 %v131, %s132
      %v134 = vpop.permute.xlu0 %133
      %s135 = vtos %v134
      %v136 = vstv %s77
      %v137 = vlaneseq
      %v138 = vand.u32 %v137, 127
      %vm139 = vcmp.eq.s32.totalorder %v138, %v136
      %v140 = vstv %s135
      %v141 = vld [vmem:[#allocation2] ss:$0 sm:$0xff]
      %v142 = vsel %vm139, %v140, %v141
      %143 = vst [vmem:[#allocation2] sm:$0x1] %v142
      %s144 = scalar_lea.vmem [#allocation1], %s77
      %s145 = scalar_lea.vmem [#allocation1], %s135
      %v146 = vld [vmem:[%s144] ss:$0 sm:$0xff]
      %v147 = vld [vmem:[%s145] ss:$0 sm:$0xff]
      %148 = vst [vmem:[%s145] sm:$0x1] %v146
      %149 = vst [vmem:[%s144] sm:$0x1] %v147
      %s150 = scalar_lea.vmem [#allocation7], %s77
      %s151 = scalar_lea.vmem [#allocation7], %s135
      %v152 = vld [vmem:[%s150] ss:$0 sm:$0xff]
      %v153 = vld [vmem:[%s151] ss:$0 sm:$0xff]
      %154 = vst [vmem:[%s151] sm:$0x1] %v152
      %155 = vst [vmem:[%s150] sm:$0x1] %v153
      %vm156 = vcmp.ne.f32.partialorder %v147, 0.0
      %vm157 = vmand %vm139, %vm156
      %v158 = vsel %vm157, %v147, 1.0
      %v159 = vlaneseq
      %v160 = vand.u32 %v159, 127
      %v161 = vstv %s77
      %vm162 = vcmp.gt.s32.totalorder %v160, %v161
      %v163 = vsel %vm162, %v147, 0.0
      %v164 = vlaneseq
      %v165 = vshrl.u32 %v164, 7
      %v166 = vmov %v165
      %v167 = vld [vmem:[#allocation1] sm:$0xff]
      %v169 = vstv %s77
      %vm170 = vcmp.gt.s32.totalorder %v166, %v169
      %v171 = vsel %vm170, %v158, 1.0
      %v172 = vrcp.pop %v171
      %v173 = vmul.f32 %v167, %v172
      %vm174 = vmand %vm170, %vm139
      %v175 = vsel %vm174, %v173, 0.0
      %176 = vadd.xlane.f32.xlu0 %v175
      %v177 = vpop.xlane.xlu0 %176
      %v178 = vmul.f32 %v177, %v163
      %v179 = vsub.f32 %v173, %v178
      %180 = vst [vmem:[#allocation1] sm:$0xff] %v179
    $region29: #{custom-call.11} parent=1 // loop_footer
      %s81 = sadd.s32 1, %s77
    $region30: #{custom-call.11} parent=1 // loop_footer_branch
      %76 = sbr.rel target = $region26
    $region31: #{custom-call.11} parent=1 // loop_exit
      _
    %v181 = vld [vmem:[#allocation7] sm:$0xff]
    %s182 = scalar_lea.vmem [#allocation7], 8
    %s183 = scalar_lea.vmem [#allocation7], 16
    %s184 = scalar_lea.vmem [#allocation7], 24
    %s185 = scalar_lea.vmem [#allocation7], 32
    %s186 = scalar_lea.vmem [#allocation7], 40
    %s187 = scalar_lea.vmem [#allocation7], 48
    %s188 = scalar_lea.vmem [#allocation7], 56
    %s189 = scalar_lea.vmem [#allocation7], 64
    %s190 = scalar_lea.vmem [#allocation7], 72
    %s191 = scalar_lea.vmem [#allocation7], 80
    %s192 = scalar_lea.vmem [#allocation7], 88
    %s193 = scalar_lea.vmem [#allocation7], 96
    %s194 = scalar_lea.vmem [#allocation7], 104
    %s195 = scalar_lea.vmem [#allocation7], 112
    %s196 = scalar_lea.vmem [#allocation7], 120
    %197 = vxpose.xlu0.b32.start [1/16] %v181, 128
    %198 = vxpose.xlu0.b32.cont [2/16] 0, 128
    %199 = vxpose.xlu0.b32.cont [3/16] 0, 128
    %200 = vxpose.xlu0.b32.cont [4/16] 0, 128
    %201 = vxpose.xlu0.b32.cont [5/16] 0, 128
    %202 = vxpose.xlu0.b32.cont [6/16] 0, 128
    %203 = vxpose.xlu0.b32.cont [7/16] 0, 128
    %204 = vxpose.xlu0.b32.cont [8/16] 0, 128
    %205 = vxpose.xlu0.b32.cont [9/16] 0, 128
    %206 = vxpose.xlu0.b32.cont [10/16] 0, 128
    %207 = vxpose.xlu0.b32.cont [11/16] 0, 128
    %208 = vxpose.xlu0.b32.cont [12/16] 0, 128
    %209 = vxpose.xlu0.b32.cont [13/16] 0, 128
    %210 = vxpose.xlu0.b32.cont [14/16] 0, 128
    %211 = vxpose.xlu0.b32.cont [15/16] 0, 128
    %212 = vxpose.xlu0.b32.end [16/16] 0, 128
    %v213 = vpop.trf.xlu0
    %v214 = vpop.trf.xlu0
    %v215 = vpop.trf.xlu0
    %v216 = vpop.trf.xlu0
    %v217 = vpop.trf.xlu0
    %v218 = vpop.trf.xlu0
    %v219 = vpop.trf.xlu0
    %v220 = vpop.trf.xlu0
    %v221 = vpop.trf.xlu0
    %v222 = vpop.trf.xlu0
    %v223 = vpop.trf.xlu0
    %v224 = vpop.trf.xlu0
    %v225 = vpop.trf.xlu0
    %v226 = vpop.trf.xlu0
    %v227 = vpop.trf.xlu0
    %v228 = vpop.trf.xlu0
    %229 = vst [vmem:[#allocation5] sm:$0x1] %v213
    %s231 = sshllo.u32 0, 1
    %v233 = vld [vmem:[#allocation2] sm:%s231]
    %s234 = sshllo.u32 0, 1
    %235 = vst [vmem:[#allocation3] sm:%s234] %v233
    %s237 = sshllo.u32 0, 1
    %v239 = vld [vmem:[#allocation5] sm:%s237]
    %s240 = sshllo.u32 0, 1
    %241 = vst [vmem:[#allocation6] sm:%s240] %v239
    %p243 = scmp.gt.s32.totalorder 8, 0
    // Predicated region
    $region32: #{custom-call.11} parent=1 // pred_check
      %p244 = pneg %p243
    $region33: #{custom-call.11} parent=1 // pred_check_branch
      %246 = sbr.rel (%p244) target = $region35
    $region34: #{custom-call.11} parent=1 // pred_region
      %s247 = sshra.s32 8, 3
      %p248 = scmp.gt.s32.totalorder %s247, 0
      // Predicated region
      $region36: #{custom-call.11} parent=34 // pred_check
        %p249 = pneg %p248
      $region37: #{custom-call.11} parent=34 // pred_check_branch
        %251 = sbr.rel (%p249) target = $region39
      $region38: #{custom-call.11} parent=34 // pred_region
        %s252 = ssub.s32 %s247, 1
        %s253 = smul.u32 %s252, 128
        %s254 = sshra.s32 %s253, 4
        %s255 = scalar_lea.vmem [#allocation1], %s254
        %v256 = vld [vmem:[#allocation1] sm:$0xff]
        // While loop
        $region40: #{custom-call.11} parent=38 // loop_pre_header
          _
        $region41: #{custom-call.11} parent=38 // loop_header
          %s257 = sphi [#allocation1], %s279
          %s258 = sphi %s1, %s280
          %v259 = vphi %v256, %v281
          %s260 = ssub.s32 %s255, 64
          %p261 = scmp.gt.s32.totalorder %s257, %s260
        $region42: #{custom-call.11} parent=38 // loop_header_branch
          %263 = sbr.rel (%p261) target = $region46
        $region43: #{custom-call.11} parent=38 // loop_body
          %264 = vst [vmem:[%s258] sm:$0xff] %v259
          %v265 = vld [vmem:[%s257 + $0x8] sm:$0xff]
          %266 = vst [vmem:[%s258 + $0x8] sm:$0xff] %v265
          %v267 = vld [vmem:[%s257 + $0x10] sm:$0xff]
          %268 = vst [vmem:[%s258 + $0x10] sm:$0xff] %v267
          %v269 = vld [vmem:[%s257 + $0x18] sm:$0xff]
          %270 = vst [vmem:[%s258 + $0x18] sm:$0xff] %v269
          %v271 = vld [vmem:[%s257 + $0x20] sm:$0xff]
          %272 = vst [vmem:[%s258 + $0x20] sm:$0xff] %v271
          %v273 = vld [vmem:[%s257 + $0x28] sm:$0xff]
          %274 = vst [vmem:[%s258 + $0x28] sm:$0xff] %v273
          %v275 = vld [vmem:[%s257 + $0x30] sm:$0xff]
          %276 = vst [vmem:[%s258 + $0x30] sm:$0xff] %v275
          %v277 = vld [vmem:[%s257 + $0x38] sm:$0xff]
          %278 = vst [vmem:[%s258 + $0x38] sm:$0xff] %v277
        $region44: #{custom-call.11} parent=38 // loop_footer
          %s279 = scalar_lea.vmem %s257, 64
          %s280 = scalar_lea.vmem %s258, 64
          %v281 = vld [vmem:[%s257 + $0x40] sm:$0xff]
        $region45: #{custom-call.11} parent=38 // loop_footer_branch
          %282 = sbr.rel target = $region41
        $region46: #{custom-call.11} parent=38 // loop_exit
          _
        // While loop
        $region47: #{custom-call.11} parent=38 // loop_pre_header
          _
        $region48: #{custom-call.11} parent=38 // loop_header
          %s283 = sphi %s257, %s291
          %s284 = sphi %s258, %s292
          %v285 = vphi %v259, %v285
          %p286 = scmp.gt.s32.totalorder %s283, %s255
        $region49: #{custom-call.11} parent=38 // loop_header_branch
          %288 = sbr.rel (%p286) target = $region53
        $region50: #{custom-call.11} parent=38 // loop_body
          %v289 = vld [vmem:[%s283] sm:$0xff]
          %290 = vst [vmem:[%s284] sm:$0xff] %v289
        $region51: #{custom-call.11} parent=38 // loop_footer
          %s291 = scalar_lea.vmem %s283, 8
          %s292 = scalar_lea.vmem %s284, 8
        $region52: #{custom-call.11} parent=38 // loop_footer_branch
          %293 = sbr.rel target = $region48
        $region53: #{custom-call.11} parent=38 // loop_exit
          _
      $region39: #{custom-call.11} parent=34 // pred_fallthru
        _
      %s294 = sand.u32 8, 7
      %s295 = sshllo.u32 0, %s294
      %s296 = smul.u32 %s247, 128
      %s297 = sshra.s32 %s296, 4
      %s298 = scalar_lea.vmem %s1, %s297
      %s299 = smul.u32 %s247, 128
      %s300 = sshra.s32 %s299, 4
      %s301 = scalar_lea.vmem [#allocation1], %s300
      %v302 = vld [vmem:[%s301] sm:%s295]
      %303 = vst [vmem:[%s298] sm:%s295] %v302
    $region35: #{custom-call.11} parent=1 // pred_fallthru
      _
    // Predicated region
    $region54: #{custom-call.11} parent=1 // pred_check
      _
    $region55: #{custom-call.11} parent=1 // pred_check_branch
      %305 = sbr.rel (0) target = $region57
    $region56: #{custom-call.11} parent=1 // pred_region
      %s307 = ssub.s32 16, 16
      %308 = vsyncadd [#allocation4], %s307
      %s309 = sshll.u32 [#allocation3], 4
      %s310 = int_to_ptr.vmem [resolvable:$true] %s309
      %312 = dma.vmem_to_hbm [thread:$0]  %s310, 16, %s2, [#allocation4]
    $region57: #{custom-call.11} parent=1 // pred_fallthru
      _
    // Predicated region
    $region58: #{custom-call.11} parent=1 // pred_check
      _
    $region59: #{custom-call.11} parent=1 // pred_check_branch
      %314 = sbr.rel (0) target = $region61
    $region60: #{custom-call.11} parent=1 // pred_region
      %p316 = scmp.gt.s32.totalorder 1, 0
      // Predicated region
      $region62: #{custom-call.11} parent=60 // pred_check
        %p317 = pneg %p316
      $region63: #{custom-call.11} parent=60 // pred_check_branch
        %319 = sbr.rel (%p317) target = $region65
      $region64: #{custom-call.11} parent=60 // pred_region
        %s320 = sshra.s32 1, 3
        %p321 = scmp.gt.s32.totalorder %s320, 0
        // Predicated region
        $region66: #{custom-call.11} parent=64 // pred_check
          %p322 = pneg %p321
        $region67: #{custom-call.11} parent=64 // pred_check_branch
          %324 = sbr.rel (%p322) target = $region69
        $region68: #{custom-call.11} parent=64 // pred_region
          %s325 = ssub.s32 %s320, 1
          %s326 = smul.u32 %s325, 128
          %s327 = sshra.s32 %s326, 4
          %s328 = scalar_lea.vmem [#allocation6], %s327
          %v329 = vld [vmem:[#allocation6] sm:$0xff]
          // While loop
          $region70: #{custom-call.11} parent=68 // loop_pre_header
            _
          $region71: #{custom-call.11} parent=68 // loop_header
            %s330 = sphi [#allocation6], %s352
            %s331 = sphi %s3, %s353
            %v332 = vphi %v329, %v354
            %s333 = ssub.s32 %s328, 64
            %p334 = scmp.gt.s32.totalorder %s330, %s333
          $region72: #{custom-call.11} parent=68 // loop_header_branch
            %336 = sbr.rel (%p334) target = $region76
          $region73: #{custom-call.11} parent=68 // loop_body
            %337 = vst [vmem:[%s331] sm:$0xff] %v332
            %v338 = vld [vmem:[%s330 + $0x8] sm:$0xff]
            %339 = vst [vmem:[%s331 + $0x8] sm:$0xff] %v338
            %v340 = vld [vmem:[%s330 + $0x10] sm:$0xff]
            %341 = vst [vmem:[%s331 + $0x10] sm:$0xff] %v340
            %v342 = vld [vmem:[%s330 + $0x18] sm:$0xff]
            %343 = vst [vmem:[%s331 + $0x18] sm:$0xff] %v342
            %v344 = vld [vmem:[%s330 + $0x20] sm:$0xff]
            %345 = vst [vmem:[%s331 + $0x20] sm:$0xff] %v344
            %v346 = vld [vmem:[%s330 + $0x28] sm:$0xff]
            %347 = vst [vmem:[%s331 + $0x28] sm:$0xff] %v346
            %v348 = vld [vmem:[%s330 + $0x30] sm:$0xff]
            %349 = vst [vmem:[%s331 + $0x30] sm:$0xff] %v348
            %v350 = vld [vmem:[%s330 + $0x38] sm:$0xff]
            %351 = vst [vmem:[%s331 + $0x38] sm:$0xff] %v350
          $region74: #{custom-call.11} parent=68 // loop_footer
            %s352 = scalar_lea.vmem %s330, 64
            %s353 = scalar_lea.vmem %s331, 64
            %v354 = vld [vmem:[%s330 + $0x40] sm:$0xff]
          $region75: #{custom-call.11} parent=68 // loop_footer_branch
            %355 = sbr.rel target = $region71
          $region76: #{custom-call.11} parent=68 // loop_exit
            _
          // While loop
          $region77: #{custom-call.11} parent=68 // loop_pre_header
            _
          $region78: #{custom-call.11} parent=68 // loop_header
            %s356 = sphi %s330, %s364
            %s357 = sphi %s331, %s365
            %v358 = vphi %v332, %v358
            %p359 = scmp.gt.s32.totalorder %s356, %s328
          $region79: #{custom-call.11} parent=68 // loop_header_branch
            %361 = sbr.rel (%p359) target = $region83
          $region80: #{custom-call.11} parent=68 // loop_body
            %v362 = vld [vmem:[%s356] sm:$0xff]
            %363 = vst [vmem:[%s357] sm:$0xff] %v362
          $region81: #{custom-call.11} parent=68 // loop_footer
            %s364 = scalar_lea.vmem %s356, 8
            %s365 = scalar_lea.vmem %s357, 8
          $region82: #{custom-call.11} parent=68 // loop_footer_branch
            %366 = sbr.rel target = $region78
          $region83: #{custom-call.11} parent=68 // loop_exit
            _
        $region69: #{custom-call.11} parent=64 // pred_fallthru
          _
        %s367 = sand.u32 1, 7
        %s368 = sshllo.u32 0, %s367
        %s369 = smul.u32 %s320, 128
        %s370 = sshra.s32 %s369, 4
        %s371 = scalar_lea.vmem %s3, %s370
        %s372 = smul.u32 %s320, 128
        %s373 = sshra.s32 %s372, 4
        %s374 = scalar_lea.vmem [#allocation6], %s373
        %v375 = vld [vmem:[%s374] sm:%s368]
        %376 = vst [vmem:[%s371] sm:%s368] %v375
      $region65: #{custom-call.11} parent=60 // pred_fallthru
        _
    $region61: #{custom-call.11} parent=1 // pred_fallthru
      _
    // Predicated region
    $region84: #{custom-call.11} parent=1 // pred_check
      _
    $region85: #{custom-call.11} parent=1 // pred_check_branch
      %378 = sbr.rel (0) target = $region87
    $region86: #{custom-call.11} parent=1 // pred_region
      %379 = dma.done [#allocation4], 16
    $region87: #{custom-call.11} parent=1 // pred_fallthru
      _
    // Predicated region
    $region88: #{custom-call.11} parent=1 // pred_check
      _
    $region89: #{custom-call.11} parent=1 // pred_check_branch
      %381 = sbr.rel (0) target = $region91
    $region90: #{custom-call.11} parent=1 // pred_region
      _
    $region91: #{custom-call.11} parent=1 // pred_fallthru
      _
    %382 = vsyncpa [#allocation4], 1

// kernel: custom-call.13
$region0: #{custom-call.13}
  %s0 = inlined_call_operand.vmem [shape: f32[1,8,8], index: 0, kind: input, shape index: {}]
  %s1 = inlined_call_operand.vmem [shape: f32[1,8,8], index: 1, kind: output, shape index: {}]
  $region1: #{custom-call.13} parent=0
    #allocation0 [shape = 'u8[4096]{0}', space=vmem, size = 0x1000, scoped, tag = 'operand span for operand 0']
    #allocation1 [shape = 'u8[4096]{0}', space=vmem, size = 0x1000, scoped, tag = 'operand span for operand 1']
    #allocation2 [shape = 'f32[8,8]{1,0}', space=vmem, size = 0x1000, scoped, tag = 'rescaled input a']
    // Predicated region
    $region2: #{custom-call.13} parent=1 // pred_check
      _
    $region3: #{custom-call.13} parent=1 // pred_check_branch
      %3 = sbr.rel (0) target = $region5
    $region4: #{custom-call.13} parent=1 // pred_region
      // Predicated region
      $region6: #{custom-call.13} parent=4 // pred_check
        _
      $region7: #{custom-call.13} parent=4 // pred_check_branch
        %5 = sbr.rel (0) target = $region9
      $region8: #{custom-call.13} parent=4 // pred_region
        // Predicated region
        $region21: #{custom-call.13} parent=8 // pred_check
          _
        $region22: #{custom-call.13} parent=8 // pred_check_branch
          %20 = sbr.rel (0) target = $region24
        $region23: #{custom-call.13} parent=8 // pred_region
          loop: start=0, step=1, limit=1
          $region25: #{custom-call.13} parent=23 // loop_pre_header
            _
          $region26: #{custom-call.13} parent=23 // loop_header
            %s22 = sphi 0, %s26
            %p23 = scmp.ge.s32.totalorder %s22, 1
            %s27 = sphi %s0, %s0
            %s28 = sphi [#allocation0], [#allocation0]
          $region27: #{custom-call.13} parent=23 // loop_header_branch
            %25 = sbr.rel (%p23) target = $region31
          $region28: #{custom-call.13} parent=23 // loop_body
            %v29 = vld [vmem:[%s27] sm:$0xff]
            %30 = vst [vmem:[%s28] sm:$0xff] %v29
          $region29: #{custom-call.13} parent=23 // loop_footer
            %s26 = sadd.s32 1, %s22
          $region30: #{custom-call.13} parent=23 // loop_footer_branch
            %21 = sbr.rel target = $region26
          $region31: #{custom-call.13} parent=23 // loop_exit
            _
        $region24: #{custom-call.13} parent=8 // pred_fallthru
          _
        // Predicated region
        $region32: #{custom-call.13} parent=8 // pred_check
          _
        $region33: #{custom-call.13} parent=8 // pred_check_branch
          %32 = sbr.rel target = $region35
        $region34: #{custom-call.13} parent=8 // pred_region
          _
        $region35: #{custom-call.13} parent=8 // pred_fallthru
          _
      $region9: #{custom-call.13} parent=4 // pred_fallthru
        _
      // Predicated region
      $region10: #{custom-call.13} parent=4 // pred_check
        _
      $region11: #{custom-call.13} parent=4 // pred_check_branch
        %7 = sbr.rel target = $region13
      $region12: #{custom-call.13} parent=4 // pred_region
        loop: start=0, step=1, limit=1
        $region14: #{custom-call.13} parent=12 // loop_pre_header
          _
        $region15: #{custom-call.13} parent=12 // loop_header
          %s10 = sphi 0, %s14
          %p11 = scmp.ge.s32.totalorder %s10, 1
          %s15 = sphi %s0, %s0
          %s16 = sphi [#allocation0], [#allocation0]
        $region16: #{custom-call.13} parent=12 // loop_header_branch
          %13 = sbr.rel (%p11) target = $region20
        $region17: #{custom-call.13} parent=12 // loop_body
          %v17 = vld [vmem:[%s15] sm:$0xff]
          %18 = vst [vmem:[%s16] sm:$0xff] %v17
        $region18: #{custom-call.13} parent=12 // loop_footer
          %s14 = sadd.s32 1, %s10
        $region19: #{custom-call.13} parent=12 // loop_footer_branch
          %9 = sbr.rel target = $region15
        $region20: #{custom-call.13} parent=12 // loop_exit
          _
      $region13: #{custom-call.13} parent=4 // pred_fallthru
        _
    $region5: #{custom-call.13} parent=1 // pred_fallthru
      _
    %33 = vnop
    %v34 = vlaneseq
    %v35 = vand.u32 %v34, 127
    %vm36 = vcmp.lt.s32.totalorder %v35, 8
    %v37 = vlaneseq
    %v38 = vshrl.u32 %v37, 7
    %vm40 = vcmp.eq.s32.totalorder %v38, %v35
    %v41 = vld [vmem:[#allocation0] sm:$0xff]
    %v42 = vsel %vm40, %v41, 0.0
    %43 = vadd.xlane.f32.xlu0 %v42
    %v44 = vpop.xlane.xlu0 %43
    %vm45 = vcmp.ge.s32.totalorder %v38, %v35
    %vm46 = vmand %vm45, %vm36
    %v47 = vsel %vm46, %v41, 0.0
    %v48 = vrcp.pop %v44
    %v49 = vmul.f32 %v47, %v48
    %50 = vst [vmem:[#allocation2] sm:$0xff] %v49
    %v51 = vlaneseq
    %v52 = vand.u32 %v51, 127
    %v53 = vlaneseq
    %v54 = vshrl.u32 %v53, 7
    %vm56 = vcmp.eq.s32.totalorder %v52, %v54
    %v57 = vlaneseq
    %v58 = vand.u32 %v57, 127
    %vm59 = vcmp.eq.s32.totalorder %v58, 0
    %v60 = vsel %vm59, 1.0, -1.0
    %v61 = vsel %vm56, %v60, 0.0
    %s62 = scalar_lea.vmem [#allocation2], 1
    %v63 = vld [vmem:[%s62] ss:$0 sm:$0xff]
    %v64 = vxor.u32 %v63, 2147483648
    %v65 = vlaneseq
    %v66 = vand.u32 %v65, 127
    %vm67 = vcmp.eq.s32.totalorder %v66, 1
    %v68 = vmul.f32 %v64, %v61
    %69 = vadd.xlane.f32.xlu0 %v68
    %v70 = vpop.xlane.xlu0 %69
    %v71 = vsel %vm67, %v70, %v61
    %s72 = scalar_lea.vmem [#allocation2], 2
    %v73 = vld [vmem:[%s72] ss:$0 sm:$0xff]
    %v74 = vxor.u32 %v73, 2147483648
    %v75 = vlaneseq
    %v76 = vand.u32 %v75, 127
    %vm77 = vcmp.eq.s32.totalorder %v76, 2
    %v78 = vmul.f32 %v74, %v71
    %79 = vadd.xlane.f32.xlu0 %v78
    %v80 = vpop.xlane.xlu0 %79
    %v81 = vsel %vm77, %v80, %v71
    %s82 = scalar_lea.vmem [#allocation2], 3
    %v83 = vld [vmem:[%s82] ss:$0 sm:$0xff]
    %v84 = vxor.u32 %v83, 2147483648
    %v85 = vlaneseq
    %v86 = vand.u32 %v85, 127
    %vm87 = vcmp.eq.s32.totalorder %v86, 3
    %v88 = vmul.f32 %v84, %v81
    %89 = vadd.xlane.f32.xlu0 %v88
    %v90 = vpop.xlane.xlu0 %89
    %v91 = vsel %vm87, %v90, %v81
    %s92 = scalar_lea.vmem [#allocation2], 4
    %v93 = vld [vmem:[%s92] ss:$0 sm:$0xff]
    %v94 = vxor.u32 %v93, 2147483648
    %v95 = vlaneseq
    %v96 = vand.u32 %v95, 127
    %vm97 = vcmp.eq.s32.totalorder %v96, 4
    %v98 = vmul.f32 %v94, %v91
    %99 = vadd.xlane.f32.xlu0 %v98
    %v100 = vpop.xlane.xlu0 %99
    %v101 = vsel %vm97, %v100, %v91
    %s102 = scalar_lea.vmem [#allocation2], 5
    %v103 = vld [vmem:[%s102] ss:$0 sm:$0xff]
    %v104 = vxor.u32 %v103, 2147483648
    %v105 = vlaneseq
    %v106 = vand.u32 %v105, 127
    %vm107 = vcmp.eq.s32.totalorder %v106, 5
    %v108 = vmul.f32 %v104, %v101
    %109 = vadd.xlane.f32.xlu0 %v108
    %v110 = vpop.xlane.xlu0 %109
    %v111 = vsel %vm107, %v110, %v101
    %s112 = scalar_lea.vmem [#allocation2], 6
    %v113 = vld [vmem:[%s112] ss:$0 sm:$0xff]
    %v114 = vxor.u32 %v113, 2147483648
    %v115 = vlaneseq
    %v116 = vand.u32 %v115, 127
    %vm117 = vcmp.eq.s32.totalorder %v116, 6
    %v118 = vmul.f32 %v114, %v111
    %119 = vadd.xlane.f32.xlu0 %v118
    %v120 = vpop.xlane.xlu0 %119
    %v121 = vsel %vm117, %v120, %v111
    %s122 = scalar_lea.vmem [#allocation2], 7
    %v123 = vld [vmem:[%s122] ss:$0 sm:$0xff]
    %v124 = vxor.u32 %v123, 2147483648
    %v125 = vlaneseq
    %v126 = vand.u32 %v125, 127
    %vm127 = vcmp.eq.s32.totalorder %v126, 7
    %v128 = vmul.f32 %v124, %v121
    %129 = vadd.xlane.f32.xlu0 %v128
    %v130 = vpop.xlane.xlu0 %129
    %v131 = vsel %vm127, %v130, %v121
    %v132 = vrcp.pop %v44
    %v133 = vmul.f32 %v131, %v132
    %vm134 = vweird.f32 %v44
    %v135 = vsel %vm134, %v131, %v133
    %136 = vst [vmem:[#allocation1] sm:$0xff] %v135
    // Predicated region
    $region36: #{custom-call.13} parent=1 // pred_check
      _
    $region37: #{custom-call.13} parent=1 // pred_check_branch
      %138 = sbr.rel (0) target = $region39
    $region38: #{custom-call.13} parent=1 // pred_region
      // Predicated region
      $region40: #{custom-call.13} parent=38 // pred_check
        _
      $region41: #{custom-call.13} parent=38 // pred_check_branch
        %140 = sbr.rel (0) target = $region43
      $region42: #{custom-call.13} parent=38 // pred_region
        // Predicated region
        $region55: #{custom-call.13} parent=42 // pred_check
          _
        $region56: #{custom-call.13} parent=42 // pred_check_branch
          %155 = sbr.rel (0) target = $region58
        $region57: #{custom-call.13} parent=42 // pred_region
          loop: start=0, step=1, limit=1
          $region59: #{custom-call.13} parent=57 // loop_pre_header
            _
          $region60: #{custom-call.13} parent=57 // loop_header
            %s157 = sphi 0, %s161
            %p158 = scmp.ge.s32.totalorder %s157, 1
            %s162 = sphi [#allocation1], [#allocation1]
            %s163 = sphi %s1, %s1
          $region61: #{custom-call.13} parent=57 // loop_header_branch
            %160 = sbr.rel (%p158) target = $region65
          $region62: #{custom-call.13} parent=57 // loop_body
            %v164 = vld [vmem:[%s162] sm:$0xff]
            %165 = vst [vmem:[%s163] sm:$0xff] %v164
          $region63: #{custom-call.13} parent=57 // loop_footer
            %s161 = sadd.s32 1, %s157
          $region64: #{custom-call.13} parent=57 // loop_footer_branch
            %156 = sbr.rel target = $region60
          $region65: #{custom-call.13} parent=57 // loop_exit
            _
        $region58: #{custom-call.13} parent=42 // pred_fallthru
          _
        // Predicated region
        $region66: #{custom-call.13} parent=42 // pred_check
          _
        $region67: #{custom-call.13} parent=42 // pred_check_branch
          %167 = sbr.rel target = $region69
        $region68: #{custom-call.13} parent=42 // pred_region
          _
        $region69: #{custom-call.13} parent=42 // pred_fallthru
          _
      $region43: #{custom-call.13} parent=38 // pred_fallthru
        _
      // Predicated region
      $region44: #{custom-call.13} parent=38 // pred_check
        _
      $region45: #{custom-call.13} parent=38 // pred_check_branch
        %142 = sbr.rel target = $region47
      $region46: #{custom-call.13} parent=38 // pred_region
        loop: start=0, step=1, limit=1
        $region48: #{custom-call.13} parent=46 // loop_pre_header
          _
        $region49: #{custom-call.13} parent=46 // loop_header
          %s145 = sphi 0, %s149
          %p146 = scmp.ge.s32.totalorder %s145, 1
          %s150 = sphi [#allocation1], [#allocation1]
          %s151 = sphi %s1, %s1
        $region50: #{custom-call.13} parent=46 // loop_header_branch
          %148 = sbr.rel (%p146) target = $region54
        $region51: #{custom-call.13} parent=46 // loop_body
          %v152 = vld [vmem:[%s150] sm:$0xff]
          %153 = vst [vmem:[%s151] sm:$0xff] %v152
        $region52: #{custom-call.13} parent=46 // loop_footer
          %s149 = sadd.s32 1, %s145
        $region53: #{custom-call.13} parent=46 // loop_footer_branch
          %144 = sbr.rel target = $region49
        $region54: #{custom-call.13} parent=46 // loop_exit
          _
      $region47: #{custom-call.13} parent=38 // pred_fallthru
        _
    $region39: #{custom-call.13} parent=1 // pred_fallthru
      _
    %168 = vnop

// kernel: custom-call.12
$region0: #{custom-call.12}
  %s0 = inlined_call_operand.vmem [shape: f32[1,8,8], index: 0, kind: input, shape index: {}]
  %s1 = inlined_call_operand.vmem [shape: f32[1,8,8], index: 1, kind: output, shape index: {}]
  $region1: #{custom-call.12} parent=0
    #allocation0 [shape = 'u8[4096]{0}', space=vmem, size = 0x1000, scoped, tag = 'operand span for operand 0']
    #allocation1 [shape = 'u8[4096]{0}', space=vmem, size = 0x1000, scoped, tag = 'operand span for operand 1']
    #allocation2 [shape = 'f32[8,8]{1,0}', space=vmem, size = 0x1000, scoped, tag = 'rescaled input a']
    // Predicated region
    $region2: #{custom-call.12} parent=1 // pred_check
      _
    $region3: #{custom-call.12} parent=1 // pred_check_branch
      %3 = sbr.rel (0) target = $region5
    $region4: #{custom-call.12} parent=1 // pred_region
      // Predicated region
      $region6: #{custom-call.12} parent=4 // pred_check
        _
      $region7: #{custom-call.12} parent=4 // pred_check_branch
        %5 = sbr.rel (0) target = $region9
      $region8: #{custom-call.12} parent=4 // pred_region
        // Predicated region
        $region21: #{custom-call.12} parent=8 // pred_check
          _
        $region22: #{custom-call.12} parent=8 // pred_check_branch
          %20 = sbr.rel (0) target = $region24
        $region23: #{custom-call.12} parent=8 // pred_region
          loop: start=0, step=1, limit=1
          $region25: #{custom-call.12} parent=23 // loop_pre_header
            _
          $region26: #{custom-call.12} parent=23 // loop_header
            %s22 = sphi 0, %s26
            %p23 = scmp.ge.s32.totalorder %s22, 1
            %s27 = sphi %s0, %s0
            %s28 = sphi [#allocation0], [#allocation0]
          $region27: #{custom-call.12} parent=23 // loop_header_branch
            %25 = sbr.rel (%p23) target = $region31
          $region28: #{custom-call.12} parent=23 // loop_body
            %v29 = vld [vmem:[%s27] sm:$0xff]
            %30 = vst [vmem:[%s28] sm:$0xff] %v29
          $region29: #{custom-call.12} parent=23 // loop_footer
            %s26 = sadd.s32 1, %s22
          $region30: #{custom-call.12} parent=23 // loop_footer_branch
            %21 = sbr.rel target = $region26
          $region31: #{custom-call.12} parent=23 // loop_exit
            _
        $region24: #{custom-call.12} parent=8 // pred_fallthru
          _
        // Predicated region
        $region32: #{custom-call.12} parent=8 // pred_check
          _
        $region33: #{custom-call.12} parent=8 // pred_check_branch
          %32 = sbr.rel target = $region35
        $region34: #{custom-call.12} parent=8 // pred_region
          _
        $region35: #{custom-call.12} parent=8 // pred_fallthru
          _
      $region9: #{custom-call.12} parent=4 // pred_fallthru
        _
      // Predicated region
      $region10: #{custom-call.12} parent=4 // pred_check
        _
      $region11: #{custom-call.12} parent=4 // pred_check_branch
        %7 = sbr.rel target = $region13
      $region12: #{custom-call.12} parent=4 // pred_region
        loop: start=0, step=1, limit=1
        $region14: #{custom-call.12} parent=12 // loop_pre_header
          _
        $region15: #{custom-call.12} parent=12 // loop_header
          %s10 = sphi 0, %s14
          %p11 = scmp.ge.s32.totalorder %s10, 1
          %s15 = sphi %s0, %s0
          %s16 = sphi [#allocation0], [#allocation0]
        $region16: #{custom-call.12} parent=12 // loop_header_branch
          %13 = sbr.rel (%p11) target = $region20
        $region17: #{custom-call.12} parent=12 // loop_body
          %v17 = vld [vmem:[%s15] sm:$0xff]
          %18 = vst [vmem:[%s16] sm:$0xff] %v17
        $region18: #{custom-call.12} parent=12 // loop_footer
          %s14 = sadd.s32 1, %s10
        $region19: #{custom-call.12} parent=12 // loop_footer_branch
          %9 = sbr.rel target = $region15
        $region20: #{custom-call.12} parent=12 // loop_exit
          _
      $region13: #{custom-call.12} parent=4 // pred_fallthru
        _
    $region5: #{custom-call.12} parent=1 // pred_fallthru
      _
    %33 = vnop
    %v34 = vlaneseq
    %v35 = vand.u32 %v34, 127
    %vm36 = vcmp.lt.s32.totalorder %v35, 8
    %v37 = vlaneseq
    %v38 = vshrl.u32 %v37, 7
    %vm40 = vcmp.eq.s32.totalorder %v38, %v35
    %v41 = vld [vmem:[#allocation0] sm:$0xff]
    %v42 = vsel %vm40, %v41, 0.0
    %43 = vadd.xlane.f32.xlu0 %v42
    %v44 = vpop.xlane.xlu0 %43
    %vm45 = vcmp.le.s32.totalorder %v38, %v35
    %vm46 = vmand %vm45, %vm36
    %v47 = vsel %vm46, %v41, 0.0
    %v48 = vrcp.pop %v44
    %v49 = vmul.f32 %v47, %v48
    %50 = vst [vmem:[#allocation2] sm:$0xff] %v49
    %v51 = vlaneseq
    %v52 = vand.u32 %v51, 127
    %v53 = vlaneseq
    %v54 = vshrl.u32 %v53, 7
    %vm56 = vcmp.eq.s32.totalorder %v52, %v54
    %v57 = vlaneseq
    %v58 = vand.u32 %v57, 127
    %vm59 = vcmp.eq.s32.totalorder %v58, 7
    %v60 = vsel %vm59, 1.0, -1.0
    %v61 = vsel %vm56, %v60, 0.0
    %s62 = scalar_lea.vmem [#allocation2], 6
    %v63 = vld [vmem:[%s62] ss:$0 sm:$0xff]
    %v64 = vxor.u32 %v63, 2147483648
    %v65 = vlaneseq
    %v66 = vand.u32 %v65, 127
    %vm67 = vcmp.eq.s32.totalorder %v66, 6
    %v68 = vmul.f32 %v64, %v61
    %69 = vadd.xlane.f32.xlu0 %v68
    %v70 = vpop.xlane.xlu0 %69
    %v71 = vsel %vm67, %v70, %v61
    %s72 = scalar_lea.vmem [#allocation2], 5
    %v73 = vld [vmem:[%s72] ss:$0 sm:$0xff]
    %v74 = vxor.u32 %v73, 2147483648
    %v75 = vlaneseq
    %v76 = vand.u32 %v75, 127
    %vm77 = vcmp.eq.s32.totalorder %v76, 5
    %v78 = vmul.f32 %v74, %v71
    %79 = vadd.xlane.f32.xlu0 %v78
    %v80 = vpop.xlane.xlu0 %79
    %v81 = vsel %vm77, %v80, %v71
    %s82 = scalar_lea.vmem [#allocation2], 4
    %v83 = vld [vmem:[%s82] ss:$0 sm:$0xff]
    %v84 = vxor.u32 %v83, 2147483648
    %v85 = vlaneseq
    %v86 = vand.u32 %v85, 127
    %vm87 = vcmp.eq.s32.totalorder %v86, 4
    %v88 = vmul.f32 %v84, %v81
    %89 = vadd.xlane.f32.xlu0 %v88
    %v90 = vpop.xlane.xlu0 %89
    %v91 = vsel %vm87, %v90, %v81
    %s92 = scalar_lea.vmem [#allocation2], 3
    %v93 = vld [vmem:[%s92] ss:$0 sm:$0xff]
    %v94 = vxor.u32 %v93, 2147483648
    %v95 = vlaneseq
    %v96 = vand.u32 %v95, 127
    %vm97 = vcmp.eq.s32.totalorder %v96, 3
    %v98 = vmul.f32 %v94, %v91
    %99 = vadd.xlane.f32.xlu0 %v98
    %v100 = vpop.xlane.xlu0 %99
    %v101 = vsel %vm97, %v100, %v91
    %s102 = scalar_lea.vmem [#allocation2], 2
    %v103 = vld [vmem:[%s102] ss:$0 sm:$0xff]
    %v104 = vxor.u32 %v103, 2147483648
    %v105 = vlaneseq
    %v106 = vand.u32 %v105, 127
    %vm107 = vcmp.eq.s32.totalorder %v106, 2
    %v108 = vmul.f32 %v104, %v101
    %109 = vadd.xlane.f32.xlu0 %v108
    %v110 = vpop.xlane.xlu0 %109
    %v111 = vsel %vm107, %v110, %v101
    %s112 = scalar_lea.vmem [#allocation2], 1
    %v113 = vld [vmem:[%s112] ss:$0 sm:$0xff]
    %v114 = vxor.u32 %v113, 2147483648
    %v115 = vlaneseq
    %v116 = vand.u32 %v115, 127
    %vm117 = vcmp.eq.s32.totalorder %v116, 1
    %v118 = vmul.f32 %v114, %v111
    %119 = vadd.xlane.f32.xlu0 %v118
    %v120 = vpop.xlane.xlu0 %119
    %v121 = vsel %vm117, %v120, %v111
    %v122 = vld [vmem:[#allocation2] ss:$0 sm:$0xff]
    %v123 = vxor.u32 %v122, 2147483648
    %v124 = vlaneseq
    %v125 = vand.u32 %v124, 127
    %vm126 = vcmp.eq.s32.totalorder %v125, 0
    %v127 = vmul.f32 %v123, %v121
    %128 = vadd.xlane.f32.xlu0 %v127
    %v129 = vpop.xlane.xlu0 %128
    %v130 = vsel %vm126, %v129, %v121
    %v131 = vrcp.pop %v44
    %v132 = vmul.f32 %v130, %v131
    %vm133 = vweird.f32 %v44
    %v134 = vsel %vm133, %v130, %v132
    %135 = vst [vmem:[#allocation1] sm:$0xff] %v134
    // Predicated region
    $region36: #{custom-call.12} parent=1 // pred_check
      _
    $region37: #{custom-call.12} parent=1 // pred_check_branch
      %137 = sbr.rel (0) target = $region39
    $region38: #{custom-call.12} parent=1 // pred_region
      // Predicated region
      $region40: #{custom-call.12} parent=38 // pred_check
        _
      $region41: #{custom-call.12} parent=38 // pred_check_branch
        %139 = sbr.rel (0) target = $region43
      $region42: #{custom-call.12} parent=38 // pred_region
        // Predicated region
        $region55: #{custom-call.12} parent=42 // pred_check
          _
        $region56: #{custom-call.12} parent=42 // pred_check_branch
          %154 = sbr.rel (0) target = $region58
        $region57: #{custom-call.12} parent=42 // pred_region
          loop: start=0, step=1, limit=1
          $region59: #{custom-call.12} parent=57 // loop_pre_header
            _
          $region60: #{custom-call.12} parent=57 // loop_header
            %s156 = sphi 0, %s160
            %p157 = scmp.ge.s32.totalorder %s156, 1
            %s161 = sphi [#allocation1], [#allocation1]
            %s162 = sphi %s1, %s1
          $region61: #{custom-call.12} parent=57 // loop_header_branch
            %159 = sbr.rel (%p157) target = $region65
          $region62: #{custom-call.12} parent=57 // loop_body
            %v163 = vld [vmem:[%s161] sm:$0xff]
            %164 = vst [vmem:[%s162] sm:$0xff] %v163
          $region63: #{custom-call.12} parent=57 // loop_footer
            %s160 = sadd.s32 1, %s156
          $region64: #{custom-call.12} parent=57 // loop_footer_branch
            %155 = sbr.rel target = $region60
          $region65: #{custom-call.12} parent=57 // loop_exit
            _
        $region58: #{custom-call.12} parent=42 // pred_fallthru
          _
        // Predicated region
        $region66: #{custom-call.12} parent=42 // pred_check
          _
        $region67: #{custom-call.12} parent=42 // pred_check_branch
          %166 = sbr.rel target = $region69
        $region68: #{custom-call.12} parent=42 // pred_region
          _
        $region69: #{custom-call.12} parent=42 // pred_fallthru
          _
      $region43: #{custom-call.12} parent=38 // pred_fallthru
        _
      // Predicated region
      $region44: #{custom-call.12} parent=38 // pred_check
        _
      $region45: #{custom-call.12} parent=38 // pred_check_branch
        %141 = sbr.rel target = $region47
      $region46: #{custom-call.12} parent=38 // pred_region
        loop: start=0, step=1, limit=1
        $region48: #{custom-call.12} parent=46 // loop_pre_header
          _
        $region49: #{custom-call.12} parent=46 // loop_header
          %s144 = sphi 0, %s148
          %p145 = scmp.ge.s32.totalorder %s144, 1
          %s149 = sphi [#allocation1], [#allocation1]
          %s150 = sphi %s1, %s1
        $region50: #{custom-call.12} parent=46 // loop_header_branch
          %147 = sbr.rel (%p145) target = $region54
        $region51: #{custom-call.12} parent=46 // loop_body
          %v151 = vld [vmem:[%s149] sm:$0xff]
          %152 = vst [vmem:[%s150] sm:$0xff] %v151
        $region52: #{custom-call.12} parent=46 // loop_footer
          %s148 = sadd.s32 1, %s144
        $region53: #{custom-call.12} parent=46 // loop_footer_branch
          %143 = sbr.rel target = $region49
        $region54: #{custom-call.12} parent=46 // loop_exit
          _
      $region47: #{custom-call.12} parent=38 // pred_fallthru
        _
    $region39: #{custom-call.12} parent=1 // pred_fallthru
      _
    %167 = vnop

// kernel: sub.3
$region0: #{sub.3}
  #allocation0 [shape = 's32[1]{0}', space=sflag, size = 0x4, scoped, tag = 'scoped memory for sub.3']
  %s0 = inlined_call_operand.vmem [shape: f32[32], index: 0, kind: input, shape index: {}]
  %s1 = inlined_call_operand.vmem [shape: f32[32], index: 1, kind: input, shape index: {}]
  %s2 = inlined_call_operand.vmem [shape: f32[32], index: 2, kind: output, shape index: {}]
  %v3 = vld [vmem:[%s0] sm:$0x1]
  %v4 = vld [vmem:[%s1] sm:$0x1]
  %5 = xla_tuple %v3, %v4
  %6 = xla_tuple %5
  %v7 = vsub.f32 %v3, %v4
  %8 = xla_tuple %v7
  %9 = vst [vmem:[%s2] sm:$0x1] %v7

// kernel: tile.23
$region0: #{tile.23}
  #allocation0 [shape = 's32[1]{0}', space=sflag, size = 0x4, scoped, tag = 'scoped memory for tile.23']
  %s0 = inlined_call_operand.vmem [shape: f32[32], index: 0, kind: input, shape index: {}]
  %s1 = inlined_call_operand.vmem [shape: f32[16,32], index: 1, kind: output, shape index: {}]
  // Predicated region
  $region2: #{tile.23} parent=0 // pred_check
    _
  $region3: #{tile.23} parent=0 // pred_check_branch
    %3 = sbr.rel (0) target = $region5
  $region4: #{tile.23} parent=0 // pred_region
    _
  $region5: #{tile.23} parent=0 // pred_fallthru
    _
  %v4 = vld [vmem:[%s0] ss:$0 sm:$0xff]
  %5 = vst [vmem:[%s1] sm:$0xff] %v4
  %s6 = scalar_lea.vmem %s1, 8
  %7 = vst [vmem:[%s6] sm:$0xff] %v4

// kernel: tile.24
$region0: #{tile.24}
  %s0 = inlined_call_operand.vmem [shape: f32[16,32], index: 0, kind: input, shape index: {}]
  %s1 = inlined_call_operand.vmem [shape: f32[1,512], index: 1, kind: output, shape index: {}]
  $region1: #{tile.24} parent=0
    #allocation0 [shape = 'u8[16384]{0}', space=vmem, size = 0x4000, scoped, tag = 'scoped mem for output reshape']
    %v2 = vld [vmem:[%s0] ss:$4 sm:$0xf]
    %vm3 = vcmask 261120
    %4 = vst.msk [vmem:[#allocation0] ss:$8 sm:$0xf] %vm3, %v2
    %s5 = scalar_lea.vmem %s0, 3
    %v6 = vld [vmem:[%s5] ss:$4 sm:$0xf]
    %7 = vrot.lane.b32.xlu0 %v6, 96
    %v8 = vpop.permute.xlu0 %7
    %vm9 = vcmask 1048320
    %10 = vst.msk [vmem:[#allocation0] ss:$8 sm:$0xf] %vm9, %v8
    %s11 = scalar_lea.vmem %s0, 2
    %v12 = vld [vmem:[%s11] ss:$4 sm:$0xf]
    %13 = vrot.lane.b32.xlu0 %v12, 64
    %v14 = vpop.permute.xlu0 %13
    %vm15 = vcmask 785920
    %16 = vst.msk [vmem:[#allocation0] ss:$8 sm:$0xf] %vm15, %v14
    %s17 = scalar_lea.vmem %s0, 1
    %v18 = vld [vmem:[%s17] ss:$4 sm:$0xf]
    %19 = vrot.lane.b32.xlu0 %v18, 32
    %v20 = vpop.permute.xlu0 %19
    %vm21 = vcmask 523520
    %22 = vst.msk [vmem:[#allocation0] ss:$8 sm:$0xf] %vm21, %v20
    %s24 = sshllo.u32 0, 1
    %v26 = vld [vmem:[#allocation0] sm:%s24]
    %s27 = sshllo.u32 0, 1
    %28 = vst [vmem:[%s1] sm:%s27] %v26
    %s29 = scalar_lea.vmem [#allocation0], 8
    %v30 = vld [vmem:[%s29] sm:%s24]
    %s31 = sshllo.u32 0, 1
    %s32 = scalar_lea.vmem %s1, 1
    %33 = vst [vmem:[%s32] sm:%s31] %v30
    %s34 = scalar_lea.vmem [#allocation0], 16
    %v35 = vld [vmem:[%s34] sm:%s24]
    %s36 = sshllo.u32 0, 1
    %s37 = smul.addr 1, 2
    %s38 = scalar_lea.vmem %s1, %s37
    %39 = vst [vmem:[%s38] sm:%s36] %v35
    %s40 = scalar_lea.vmem [#allocation0], 24
    %v41 = vld [vmem:[%s40] sm:%s24]
    %s42 = sshllo.u32 0, 1
    %s43 = smul.addr 1, 3
    %s44 = scalar_lea.vmem %s1, %s43
    %45 = vst [vmem:[%s44] sm:%s42] %v41

// kernel: tile.18
$region0: #{tile.18}
  #allocation0 [shape = 's32[1]{0}', space=sflag, size = 0x4, scoped, tag = 'scoped memory for tile.18']
  %s0 = inlined_call_operand.vmem [shape: f32[8], index: 0, kind: input, shape index: {}]
  %s1 = inlined_call_operand.vmem [shape: f32[16,8], index: 1, kind: output, shape index: {}]
  // Predicated region
  $region2: #{tile.18} parent=0 // pred_check
    _
  $region3: #{tile.18} parent=0 // pred_check_branch
    %3 = sbr.rel (0) target = $region5
  $region4: #{tile.18} parent=0 // pred_region
    _
  $region5: #{tile.18} parent=0 // pred_fallthru
    _
  %v4 = vld [vmem:[%s0] ss:$0 sm:$0xff]
  %5 = vst [vmem:[%s1] sm:$0xff] %v4
  %s6 = scalar_lea.vmem %s1, 8
  %7 = vst [vmem:[%s6] sm:$0xff] %v4

// kernel: tile.19
$region0: #{tile.19}
  %s0 = inlined_call_operand.vmem [shape: f32[16,8], index: 0, kind: input, shape index: {}]
  %s1 = inlined_call_operand.vmem [shape: f32[1,128], index: 1, kind: output, shape index: {}]
  $region1: #{tile.19} parent=0
    #allocation0 [shape = 'u8[4096]{0}', space=vmem, size = 0x1000, scoped, tag = 'scoped mem for output reshape']
    %v2 = vld [vmem:[%s0] sm:$0x1]
    %vm3 = vcmask 64512
    %4 = vst.msk [vmem:[#allocation0] sm:$0x1] %vm3, %v2
    %s5 = scalar_lea.vmem %s0, 15
    %v6 = vld [vmem:[%s5] sm:$0x1]
    %7 = vrot.lane.b32.xlu0 %v6, 120
    %v8 = vpop.permute.xlu0 %7
    %vm9 = vcmask 1048512
    %10 = vst.msk [vmem:[#allocation0] sm:$0x1] %vm9, %v8
    %s11 = scalar_lea.vmem %s0, 14
    %v12 = vld [vmem:[%s11] sm:$0x1]
    %13 = vrot.lane.b32.xlu0 %v12, 112
    %v14 = vpop.permute.xlu0 %13
    %vm15 = vcmask 982912
    %16 = vst.msk [vmem:[#allocation0] sm:$0x1] %vm15, %v14
    %s17 = scalar_lea.vmem %s0, 13
    %v18 = vld [vmem:[%s17] sm:$0x1]
    %19 = vrot.lane.b32.xlu0 %v18, 104
    %v20 = vpop.permute.xlu0 %19
    %vm21 = vcmask 917312
    %22 = vst.msk [vmem:[#allocation0] sm:$0x1] %vm21, %v20
    %s23 = scalar_lea.vmem %s0, 12
    %v24 = vld [vmem:[%s23] sm:$0x1]
    %25 = vrot.lane.b32.xlu0 %v24, 96
    %v26 = vpop.permute.xlu0 %25
    %vm27 = vcmask 851712
    %28 = vst.msk [vmem:[#allocation0] sm:$0x1] %vm27, %v26
    %s29 = scalar_lea.vmem %s0, 11
    %v30 = vld [vmem:[%s29] sm:$0x1]
    %31 = vrot.lane.b32.xlu0 %v30, 88
    %v32 = vpop.permute.xlu0 %31
    %vm33 = vcmask 786112
    %34 = vst.msk [vmem:[#allocation0] sm:$0x1] %vm33, %v32
    %s35 = scalar_lea.vmem %s0, 10
    %v36 = vld [vmem:[%s35] sm:$0x1]
    %37 = vrot.lane.b32.xlu0 %v36, 80
    %v38 = vpop.permute.xlu0 %37
    %vm39 = vcmask 720512
    %40 = vst.msk [vmem:[#allocation0] sm:$0x1] %vm39, %v38
    %s41 = scalar_lea.vmem %s0, 9
    %v42 = vld [vmem:[%s41] sm:$0x1]
    %43 = vrot.lane.b32.xlu0 %v42, 72
    %v44 = vpop.permute.xlu0 %43
    %vm45 = vcmask 654912
    %46 = vst.msk [vmem:[#allocation0] sm:$0x1] %vm45, %v44
    %s47 = scalar_lea.vmem %s0, 8
    %v48 = vld [vmem:[%s47] sm:$0x1]
    %49 = vrot.lane.b32.xlu0 %v48, 64
    %v50 = vpop.permute.xlu0 %49
    %vm51 = vcmask 589312
    %52 = vst.msk [vmem:[#allocation0] sm:$0x1] %vm51, %v50
    %s53 = scalar_lea.vmem %s0, 7
    %v54 = vld [vmem:[%s53] sm:$0x1]
    %55 = vrot.lane.b32.xlu0 %v54, 56
    %v56 = vpop.permute.xlu0 %55
    %vm57 = vcmask 523712
    %58 = vst.msk [vmem:[#allocation0] sm:$0x1] %vm57, %v56
    %s59 = scalar_lea.vmem %s0, 6
    %v60 = vld [vmem:[%s59] sm:$0x1]
    %61 = vrot.lane.b32.xlu0 %v60, 48
    %v62 = vpop.permute.xlu0 %61
    %vm63 = vcmask 458112
    %64 = vst.msk [vmem:[#allocation0] sm:$0x1] %vm63, %v62
    %s65 = scalar_lea.vmem %s0, 5
    %v66 = vld [vmem:[%s65] sm:$0x1]
    %67 = vrot.lane.b32.xlu0 %v66, 40
    %v68 = vpop.permute.xlu0 %67
    %vm69 = vcmask 392512
    %70 = vst.msk [vmem:[#allocation0] sm:$0x1] %vm69, %v68
    %s71 = scalar_lea.vmem %s0, 4
    %v72 = vld [vmem:[%s71] sm:$0x1]
    %73 = vrot.lane.b32.xlu0 %v72, 32
    %v74 = vpop.permute.xlu0 %73
    %vm75 = vcmask 326912
    %76 = vst.msk [vmem:[#allocation0] sm:$0x1] %vm75, %v74
    %s77 = scalar_lea.vmem %s0, 3
    %v78 = vld [vmem:[%s77] sm:$0x1]
    %79 = vrot.lane.b32.xlu0 %v78, 24
    %v80 = vpop.permute.xlu0 %79
    %vm81 = vcmask 261312
    %82 = vst.msk [vmem:[#allocation0] sm:$0x1] %vm81, %v80
    %s83 = scalar_lea.vmem %s0, 2
    %v84 = vld [vmem:[%s83] sm:$0x1]
    %85 = vrot.lane.b32.xlu0 %v84, 16
    %v86 = vpop.permute.xlu0 %85
    %vm87 = vcmask 195712
    %88 = vst.msk [vmem:[#allocation0] sm:$0x1] %vm87, %v86
    %s89 = scalar_lea.vmem %s0, 1
    %v90 = vld [vmem:[%s89] sm:$0x1]
    %91 = vrot.lane.b32.xlu0 %v90, 8
    %v92 = vpop.permute.xlu0 %91
    %vm93 = vcmask 130112
    %94 = vst.msk [vmem:[#allocation0] sm:$0x1] %vm93, %v92
    %s96 = sshllo.u32 0, 1
    %v98 = vld [vmem:[#allocation0] sm:%s96]
    %s99 = sshllo.u32 0, 1
    %100 = vst [vmem:[%s1] sm:%s99] %v98

// kernel: daggnn_mlp_decoder.1
$region0: #{daggnn_mlp_decoder.1}
  #allocation0 [shape = 'u32[]', space=smem, size = 0x4, offset = 0x4, fixed_abs, tag = 'smem constant byte address 0x4 - core index']
  #allocation1 [shape = 'u32[144,128]{1,0:T(1,128)}', space=vmem, size = 0x12000, scoped, tag = 'internal scratch']
  %s0 = inlined_call_operand.vmem [shape: f32[1,128], index: 0, kind: input, shape index: {}]
  %s1 = inlined_call_operand.vmem [shape: f32[1,128], index: 1, kind: input, shape index: {}]
  %s2 = inlined_call_operand.vmem [shape: f32[128,128], index: 2, kind: input, shape index: {}]
  %s3 = inlined_call_operand.vmem [shape: f32[128,512], index: 3, kind: input, shape index: {}]
  %s4 = inlined_call_operand.vmem [shape: f32[1,512], index: 4, kind: input, shape index: {}]
  %s5 = inlined_call_operand.vmem [shape: f32[512,128], index: 5, kind: input, shape index: {}]
  %s6 = inlined_call_operand.vmem [shape: f32[1,128], index: 6, kind: input, shape index: {}]
  %s7 = inlined_call_operand.vmem [shape: f32[1,128], index: 7, kind: output, shape index: {0}]
  %s8 = inlined_call_operand.vmem [shape: f32[1,128], index: 8, kind: output, shape index: {1}]
  %9 = xla_tuple %s7, %s8
  %s10 = sld [smem:[#allocation0]]
  $region46: #{daggnn_mlp_decoder.1} parent=0
    _
  %s12 = ssub.s32 1, %s10
  %s13 = scalar_select 0, %s12, %s10
  // Predicated region
  $region2: #{daggnn_mlp_decoder.1} parent=0 // pred_check
    _
  $region3: #{daggnn_mlp_decoder.1} parent=0 // pred_check_branch
    %15 = sbr.rel (0) target = $region5
  $region4: #{daggnn_mlp_decoder.1} parent=0 // pred_region
    _
  $region5: #{daggnn_mlp_decoder.1} parent=0 // pred_fallthru
    _
  // Predicated region
  $region6: #{daggnn_mlp_decoder.1} parent=0 // pred_check
    _
  $region7: #{daggnn_mlp_decoder.1} parent=0 // pred_check_branch
    %17 = sbr.rel (0) target = $region9
  $region8: #{daggnn_mlp_decoder.1} parent=0 // pred_region
    _
  $region9: #{daggnn_mlp_decoder.1} parent=0 // pred_fallthru
    _
  // Predicated region
  $region10: #{daggnn_mlp_decoder.1} parent=0 // pred_check
    _
  $region11: #{daggnn_mlp_decoder.1} parent=0 // pred_check_branch
    %19 = sbr.rel (0) target = $region13
  $region12: #{daggnn_mlp_decoder.1} parent=0 // pred_region
    _
  $region13: #{daggnn_mlp_decoder.1} parent=0 // pred_fallthru
    _
  // Predicated region
  $region14: #{daggnn_mlp_decoder.1} parent=0 // pred_check
    _
  $region15: #{daggnn_mlp_decoder.1} parent=0 // pred_check_branch
    %21 = sbr.rel (0) target = $region17
  $region16: #{daggnn_mlp_decoder.1} parent=0 // pred_region
    _
  $region17: #{daggnn_mlp_decoder.1} parent=0 // pred_fallthru
    _
  // Predicated region
  $region18: #{daggnn_mlp_decoder.1} parent=0 // pred_check
    _
  $region19: #{daggnn_mlp_decoder.1} parent=0 // pred_check_branch
    %23 = sbr.rel (0) target = $region21
  $region20: #{daggnn_mlp_decoder.1} parent=0 // pred_region
    _
  $region21: #{daggnn_mlp_decoder.1} parent=0 // pred_fallthru
    _
  // Predicated region
  $region22: #{daggnn_mlp_decoder.1} parent=0 // pred_check
    _
  $region23: #{daggnn_mlp_decoder.1} parent=0 // pred_check_branch
    %25 = sbr.rel (0) target = $region25
  $region24: #{daggnn_mlp_decoder.1} parent=0 // pred_region
    _
  $region25: #{daggnn_mlp_decoder.1} parent=0 // pred_fallthru
    _
  // Predicated region
  $region26: #{daggnn_mlp_decoder.1} parent=0 // pred_check
    _
  $region27: #{daggnn_mlp_decoder.1} parent=0 // pred_check_branch
    %27 = sbr.rel (0) target = $region29
  $region28: #{daggnn_mlp_decoder.1} parent=0 // pred_region
    _
  $region29: #{daggnn_mlp_decoder.1} parent=0 // pred_fallthru
    _
  %v28 = vld [vmem:[%s0] sm:$0x1]
  %v29 = vld [vmem:[%s1] sm:$0x1]
  %v30 = vadd.f32 %v28, %v29
  %v31 = vld [vmem:[%s2] sm:$0xff]
  %v32 = vld [vmem:[%s2 + $0x8] sm:$0xff]
  %v33 = vld [vmem:[%s2 + $0x10] sm:$0xff]
  %v34 = vld [vmem:[%s2 + $0x18] sm:$0xff]
  %v35 = vld [vmem:[%s2 + $0x20] sm:$0xff]
  %v36 = vld [vmem:[%s2 + $0x28] sm:$0xff]
  %v37 = vld [vmem:[%s2 + $0x30] sm:$0xff]
  %v38 = vld [vmem:[%s2 + $0x38] sm:$0xff]
  %v39 = vld [vmem:[%s2 + $0x40] sm:$0xff]
  %v40 = vld [vmem:[%s2 + $0x48] sm:$0xff]
  %v41 = vld [vmem:[%s2 + $0x50] sm:$0xff]
  %v42 = vld [vmem:[%s2 + $0x58] sm:$0xff]
  %v43 = vld [vmem:[%s2 + $0x60] sm:$0xff]
  %v44 = vld [vmem:[%s2 + $0x68] sm:$0xff]
  %v45 = vld [vmem:[%s2 + $0x70] sm:$0xff]
  %v46 = vld [vmem:[%s2 + $0x78] sm:$0xff]
  %47 = vmatprep.subr.mxu0 0.0
  %48 = vmatpush1.msra.mxu0 %v31
  %49 = vmatprep.subr.mxu0 0.0
  %50 = vmatpush1.msra.mxu0 %v32
  %51 = vmatprep.subr.mxu0 0.0
  %52 = vmatpush1.msra.mxu0 %v33
  %53 = vmatprep.subr.mxu0 0.0
  %54 = vmatpush1.msra.mxu0 %v34
  %55 = vmatprep.subr.mxu0 0.0
  %56 = vmatpush1.msra.mxu0 %v35
  %57 = vmatprep.subr.mxu0 0.0
  %58 = vmatpush1.msra.mxu0 %v36
  %59 = vmatprep.subr.mxu0 0.0
  %60 = vmatpush1.msra.mxu0 %v37
  %61 = vmatprep.subr.mxu0 0.0
  %62 = vmatpush1.msra.mxu0 %v38
  %63 = vmatprep.subr.mxu0 0.0
  %64 = vmatpush1.msra.mxu0 %v39
  %65 = vmatprep.subr.mxu0 0.0
  %66 = vmatpush1.msra.mxu0 %v40
  %67 = vmatprep.subr.mxu0 0.0
  %68 = vmatpush1.msra.mxu0 %v41
  %69 = vmatprep.subr.mxu0 0.0
  %70 = vmatpush1.msra.mxu0 %v42
  %71 = vmatprep.subr.mxu0 0.0
  %72 = vmatpush1.msra.mxu0 %v43
  %73 = vmatprep.subr.mxu0 0.0
  %74 = vmatpush1.msra.mxu0 %v44
  %75 = vmatprep.subr.mxu0 0.0
  %76 = vmatpush1.msra.mxu0 %v45
  %77 = vmatprep.subr.mxu0 0.0
  %78 = vmatpush1.msra.mxu0 %v46
  %79 = vmatprep.subr.mxu0 0.0
  %80 = vmatpush1.msra.mxu0 0.0
  %81 = vmatprep.subr.mxu0 0.0
  %82 = vmatpush1.msra.mxu0 0.0
  %83 = vmatprep.subr.mxu0 0.0
  %84 = vmatpush1.msra.mxu0 0.0
  %85 = vmatprep.subr.mxu0 0.0
  %86 = vmatpush1.msra.mxu0 0.0
  %87 = vmatprep.subr.mxu0 0.0
  %88 = vmatpush1.msra.mxu0 0.0
  %89 = vmatprep.subr.mxu0 0.0
  %90 = vmatpush1.msra.mxu0 0.0
  %91 = vmatprep.subr.mxu0 0.0
  %92 = vmatpush1.msra.mxu0 0.0
  %93 = vmatprep.subr.mxu0 0.0
  %94 = vmatpush1.msra.mxu0 0.0
  %95 = vmatprep.subr.mxu0 0.0
  %96 = vmatpush1.msra.mxu0 0.0
  %97 = vmatprep.subr.mxu0 0.0
  %98 = vmatpush1.msra.mxu0 0.0
  %99 = vmatprep.subr.mxu0 0.0
  %100 = vmatpush1.msra.mxu0 0.0
  %101 = vmatprep.subr.mxu0 0.0
  %102 = vmatpush1.msra.mxu0 0.0
  %103 = vmatprep.subr.mxu0 0.0
  %104 = vmatpush1.msra.mxu0 0.0
  %105 = vmatprep.subr.mxu0 0.0
  %106 = vmatpush1.msra.mxu0 0.0
  %107 = vmatprep.subr.mxu0 0.0
  %108 = vmatpush1.msra.mxu0 0.0
  %109 = vmatprep.subr.mxu0 0.0
  %110 = vmatpush1.msra.mxu0 0.0
  %111 = vmatprep.mubr.f32.mxu0 0.0
  %112 = vmatmul.mubr.f32.gmra.mrb[0].mxu0 %v30
  %v113 = vpop.f32.mrb[0].mxu0
  %v114 = vadd.f32 0.0, %v113
  %v115 = vpop.f32.mrb[0].mxu0
  %116 = vdwg.mxu0
  %v117 = vsub.f32 %v114, %v29
  %118 = vst [vmem:[%s7] sm:$0x1] %v117
  %v119 = vld [vmem:[%s3] sm:$0xff]
  %v120 = vld [vmem:[%s3 + $0x8] sm:$0xff]
  %v121 = vld [vmem:[%s3 + $0x10] sm:$0xff]
  %v122 = vld [vmem:[%s3 + $0x18] sm:$0xff]
  %v123 = vld [vmem:[%s3 + $0x20] sm:$0xff]
  %v124 = vld [vmem:[%s3 + $0x28] sm:$0xff]
  %v125 = vld [vmem:[%s3 + $0x30] sm:$0xff]
  %v126 = vld [vmem:[%s3 + $0x38] sm:$0xff]
  %v127 = vld [vmem:[%s3 + $0x40] sm:$0xff]
  %v128 = vld [vmem:[%s3 + $0x48] sm:$0xff]
  %v129 = vld [vmem:[%s3 + $0x50] sm:$0xff]
  %v130 = vld [vmem:[%s3 + $0x58] sm:$0xff]
  %v131 = vld [vmem:[%s3 + $0x60] sm:$0xff]
  %v132 = vld [vmem:[%s3 + $0x68] sm:$0xff]
  %v133 = vld [vmem:[%s3 + $0x70] sm:$0xff]
  %v134 = vld [vmem:[%s3 + $0x78] sm:$0xff]
  %v135 = vld [vmem:[%s3 + $0x80] sm:$0xff]
  %v136 = vld [vmem:[%s3 + $0x88] sm:$0xff]
  %v137 = vld [vmem:[%s3 + $0x90] sm:$0xff]
  %v138 = vld [vmem:[%s3 + $0x98] sm:$0xff]
  %v139 = vld [vmem:[%s3 + $0xa0] sm:$0xff]
  %v140 = vld [vmem:[%s3 + $0xa8] sm:$0xff]
  %v141 = vld [vmem:[%s3 + $0xb0] sm:$0xff]
  %v142 = vld [vmem:[%s3 + $0xb8] sm:$0xff]
  %v143 = vld [vmem:[%s3 + $0xc0] sm:$0xff]
  %v144 = vld [vmem:[%s3 + $0xc8] sm:$0xff]
  %v145 = vld [vmem:[%s3 + $0xd0] sm:$0xff]
  %v146 = vld [vmem:[%s3 + $0xd8] sm:$0xff]
  %v147 = vld [vmem:[%s3 + $0xe0] sm:$0xff]
  %v148 = vld [vmem:[%s3 + $0xe8] sm:$0xff]
  %v149 = vld [vmem:[%s3 + $0xf0] sm:$0xff]
  %v150 = vld [vmem:[%s3 + $0xf8] sm:$0xff]
  %v151 = vld [vmem:[%s3 + $0x100] sm:$0xff]
  %v152 = vld [vmem:[%s3 + $0x108] sm:$0xff]
  %v153 = vld [vmem:[%s3 + $0x110] sm:$0xff]
  %v154 = vld [vmem:[%s3 + $0x118] sm:$0xff]
  %v155 = vld [vmem:[%s3 + $0x120] sm:$0xff]
  %v156 = vld [vmem:[%s3 + $0x128] sm:$0xff]
  %v157 = vld [vmem:[%s3 + $0x130] sm:$0xff]
  %v158 = vld [vmem:[%s3 + $0x138] sm:$0xff]
  %v159 = vld [vmem:[%s3 + $0x140] sm:$0xff]
  %v160 = vld [vmem:[%s3 + $0x148] sm:$0xff]
  %v161 = vld [vmem:[%s3 + $0x150] sm:$0xff]
  %v162 = vld [vmem:[%s3 + $0x158] sm:$0xff]
  %v163 = vld [vmem:[%s3 + $0x160] sm:$0xff]
  %v164 = vld [vmem:[%s3 + $0x168] sm:$0xff]
  %v165 = vld [vmem:[%s3 + $0x170] sm:$0xff]
  %v166 = vld [vmem:[%s3 + $0x178] sm:$0xff]
  %v167 = vld [vmem:[%s3 + $0x180] sm:$0xff]
  %v168 = vld [vmem:[%s3 + $0x188] sm:$0xff]
  %v169 = vld [vmem:[%s3 + $0x190] sm:$0xff]
  %v170 = vld [vmem:[%s3 + $0x198] sm:$0xff]
  %v171 = vld [vmem:[%s3 + $0x1a0] sm:$0xff]
  %v172 = vld [vmem:[%s3 + $0x1a8] sm:$0xff]
  %v173 = vld [vmem:[%s3 + $0x1b0] sm:$0xff]
  %v174 = vld [vmem:[%s3 + $0x1b8] sm:$0xff]
  %v175 = vld [vmem:[%s3 + $0x1c0] sm:$0xff]
  %v176 = vld [vmem:[%s3 + $0x1c8] sm:$0xff]
  %v177 = vld [vmem:[%s3 + $0x1d0] sm:$0xff]
  %v178 = vld [vmem:[%s3 + $0x1d8] sm:$0xff]
  %v179 = vld [vmem:[%s3 + $0x1e0] sm:$0xff]
  %v180 = vld [vmem:[%s3 + $0x1e8] sm:$0xff]
  %v181 = vld [vmem:[%s3 + $0x1f0] sm:$0xff]
  %v182 = vld [vmem:[%s3 + $0x1f8] sm:$0xff]
  %v183 = vld [vmem:[%s4] sm:$0xf]
  %v185 = vlaneseq
  %v186 = vshrl.u32 %v185, 7
  %v187 = vsub.s32 0, %v186
  %v188 = vrot.slane %v183, %v187
  %v189 = vlaneseq
  %v190 = vshrl.u32 %v189, 7
  %v191 = vsub.s32 1, %v190
  %v192 = vrot.slane %v183, %v191
  %v193 = vlaneseq
  %v194 = vshrl.u32 %v193, 7
  %v195 = vsub.s32 2, %v194
  %v196 = vrot.slane %v183, %v195
  %v197 = vlaneseq
  %v198 = vshrl.u32 %v197, 7
  %v199 = vsub.s32 3, %v198
  %v200 = vrot.slane %v183, %v199
  %205 = vmatprep.subr.mxu0 %v120
  %206 = vmatpush1.msra.mxu0 %v119
  %207 = vmatprep.subr.mxu0 %v124
  %208 = vmatpush1.msra.mxu0 %v123
  %209 = vmatprep.subr.mxu0 %v128
  %210 = vmatpush1.msra.mxu0 %v127
  %211 = vmatprep.subr.mxu0 %v132
  %212 = vmatpush1.msra.mxu0 %v131
  %213 = vmatprep.subr.mxu0 %v136
  %214 = vmatpush1.msra.mxu0 %v135
  %215 = vmatprep.subr.mxu0 %v140
  %216 = vmatpush1.msra.mxu0 %v139
  %217 = vmatprep.subr.mxu0 %v144
  %218 = vmatpush1.msra.mxu0 %v143
  %219 = vmatprep.subr.mxu0 %v148
  %220 = vmatpush1.msra.mxu0 %v147
  %221 = vmatprep.subr.mxu0 %v152
  %222 = vmatpush1.msra.mxu0 %v151
  %223 = vmatprep.subr.mxu0 %v156
  %224 = vmatpush1.msra.mxu0 %v155
  %225 = vmatprep.subr.mxu0 %v160
  %226 = vmatpush1.msra.mxu0 %v159
  %227 = vmatprep.subr.mxu0 %v164
  %228 = vmatpush1.msra.mxu0 %v163
  %229 = vmatprep.subr.mxu0 %v168
  %230 = vmatpush1.msra.mxu0 %v167
  %231 = vmatprep.subr.mxu0 %v172
  %232 = vmatpush1.msra.mxu0 %v171
  %233 = vmatprep.subr.mxu0 %v176
  %234 = vmatpush1.msra.mxu0 %v175
  %235 = vmatprep.subr.mxu0 %v180
  %236 = vmatpush1.msra.mxu0 %v179
  %237 = vmatprep.subr.mxu0 0.0
  %238 = vmatpush1.msra.mxu0 0.0
  %239 = vmatprep.subr.mxu0 0.0
  %240 = vmatpush1.msra.mxu0 0.0
  %241 = vmatprep.subr.mxu0 0.0
  %242 = vmatpush1.msra.mxu0 0.0
  %243 = vmatprep.subr.mxu0 0.0
  %244 = vmatpush1.msra.mxu0 0.0
  %245 = vmatprep.subr.mxu0 0.0
  %246 = vmatpush1.msra.mxu0 0.0
  %247 = vmatprep.subr.mxu0 0.0
  %248 = vmatpush1.msra.mxu0 0.0
  %249 = vmatprep.subr.mxu0 0.0
  %250 = vmatpush1.msra.mxu0 0.0
  %251 = vmatprep.subr.mxu0 0.0
  %252 = vmatpush1.msra.mxu0 0.0
  %253 = vmatprep.subr.mxu0 0.0
  %254 = vmatpush1.msra.mxu0 0.0
  %255 = vmatprep.subr.mxu0 0.0
  %256 = vmatpush1.msra.mxu0 0.0
  %257 = vmatprep.subr.mxu0 0.0
  %258 = vmatpush1.msra.mxu0 0.0
  %259 = vmatprep.subr.mxu0 0.0
  %260 = vmatpush1.msra.mxu0 0.0
  %261 = vmatprep.subr.mxu0 0.0
  %262 = vmatpush1.msra.mxu0 0.0
  %263 = vmatprep.subr.mxu0 0.0
  %264 = vmatpush1.msra.mxu0 0.0
  %265 = vmatprep.subr.mxu0 0.0
  %266 = vmatpush1.msra.mxu0 0.0
  %267 = vmatprep.subr.mxu0 0.0
  %268 = vmatpush1.msra.mxu0 0.0
  %269 = vmatprep.mubr.f32.mxu0 0.0
  %270 = vmatmul.mubr.f32.gmra.mrb[0].mxu0 %v30
  %v271 = vpop.f32.mrb[0].mxu0
  %v272 = vadd.f32 %v188, %v271
  %v273 = vpop.f32.mrb[0].mxu0
  %v274 = vadd.f32 %v192, %v273
  %275 = vdwg.mxu0
  %276 = vmatprep.subr.mxu0 %v122
  %277 = vmatpush1.msra.mxu0 %v121
  %278 = vmatprep.subr.mxu0 %v126
  %279 = vmatpush1.msra.mxu0 %v125
  %280 = vmatprep.subr.mxu0 %v130
  %281 = vmatpush1.msra.mxu0 %v129
  %282 = vmatprep.subr.mxu0 %v134
  %283 = vmatpush1.msra.mxu0 %v133
  %284 = vmatprep.subr.mxu0 %v138
  %285 = vmatpush1.msra.mxu0 %v137
  %286 = vmatprep.subr.mxu0 %v142
  %287 = vmatpush1.msra.mxu0 %v141
  %288 = vmatprep.subr.mxu0 %v146
  %289 = vmatpush1.msra.mxu0 %v145
  %290 = vmatprep.subr.mxu0 %v150
  %291 = vmatpush1.msra.mxu0 %v149
  %292 = vmatprep.subr.mxu0 %v154
  %293 = vmatpush1.msra.mxu0 %v153
  %294 = vmatprep.subr.mxu0 %v158
  %295 = vmatpush1.msra.mxu0 %v157
  %296 = vmatprep.subr.mxu0 %v162
  %297 = vmatpush1.msra.mxu0 %v161
  %298 = vmatprep.subr.mxu0 %v166
  %299 = vmatpush1.msra.mxu0 %v165
  %300 = vmatprep.subr.mxu0 %v170
  %301 = vmatpush1.msra.mxu0 %v169
  %302 = vmatprep.subr.mxu0 %v174
  %303 = vmatpush1.msra.mxu0 %v173
  %304 = vmatprep.subr.mxu0 %v178
  %305 = vmatpush1.msra.mxu0 %v177
  %306 = vmatprep.subr.mxu0 %v182
  %307 = vmatpush1.msra.mxu0 %v181
  %308 = vmatprep.subr.mxu0 0.0
  %309 = vmatpush1.msra.mxu0 0.0
  %310 = vmatprep.subr.mxu0 0.0
  %311 = vmatpush1.msra.mxu0 0.0
  %312 = vmatprep.subr.mxu0 0.0
  %313 = vmatpush1.msra.mxu0 0.0
  %314 = vmatprep.subr.mxu0 0.0
  %315 = vmatpush1.msra.mxu0 0.0
  %316 = vmatprep.subr.mxu0 0.0
  %317 = vmatpush1.msra.mxu0 0.0
  %318 = vmatprep.subr.mxu0 0.0
  %319 = vmatpush1.msra.mxu0 0.0
  %320 = vmatprep.subr.mxu0 0.0
  %321 = vmatpush1.msra.mxu0 0.0
  %322 = vmatprep.subr.mxu0 0.0
  %323 = vmatpush1.msra.mxu0 0.0
  %324 = vmatprep.subr.mxu0 0.0
  %325 = vmatpush1.msra.mxu0 0.0
  %326 = vmatprep.subr.mxu0 0.0
  %327 = vmatpush1.msra.mxu0 0.0
  %328 = vmatprep.subr.mxu0 0.0
  %329 = vmatpush1.msra.mxu0 0.0
  %330 = vmatprep.subr.mxu0 0.0
  %331 = vmatpush1.msra.mxu0 0.0
  %332 = vmatprep.subr.mxu0 0.0
  %333 = vmatpush1.msra.mxu0 0.0
  %334 = vmatprep.subr.mxu0 0.0
  %335 = vmatpush1.msra.mxu0 0.0
  %336 = vmatprep.subr.mxu0 0.0
  %337 = vmatpush1.msra.mxu0 0.0
  %338 = vmatprep.subr.mxu0 0.0
  %339 = vmatpush1.msra.mxu0 0.0
  %340 = vmatprep.mubr.f32.mxu0 0.0
  %341 = vmatmul.mubr.f32.gmra.mrb[0].mxu0 %v30
  %v342 = vpop.f32.mrb[0].mxu0
  %v343 = vadd.f32 %v196, %v342
  %v344 = vpop.f32.mrb[0].mxu0
  %v345 = vadd.f32 %v200, %v344
  %346 = vdwg.mxu0
  %v347 = vmax.f32 %v272, 0.0
  %v348 = vmax.f32 %v274, 0.0
  %v349 = vmax.f32 %v343, 0.0
  %v350 = vmax.f32 %v345, 0.0
  %v351 = vld [vmem:[%s5] sm:$0xff]
  %v352 = vld [vmem:[%s5 + $0x8] sm:$0xff]
  %v353 = vld [vmem:[%s5 + $0x10] sm:$0xff]
  %v354 = vld [vmem:[%s5 + $0x18] sm:$0xff]
  %v355 = vld [vmem:[%s5 + $0x20] sm:$0xff]
  %v356 = vld [vmem:[%s5 + $0x28] sm:$0xff]
  %v357 = vld [vmem:[%s5 + $0x30] sm:$0xff]
  %v358 = vld [vmem:[%s5 + $0x38] sm:$0xff]
  %v359 = vld [vmem:[%s5 + $0x40] sm:$0xff]
  %v360 = vld [vmem:[%s5 + $0x48] sm:$0xff]
  %v361 = vld [vmem:[%s5 + $0x50] sm:$0xff]
  %v362 = vld [vmem:[%s5 + $0x58] sm:$0xff]
  %v363 = vld [vmem:[%s5 + $0x60] sm:$0xff]
  %v364 = vld [vmem:[%s5 + $0x68] sm:$0xff]
  %v365 = vld [vmem:[%s5 + $0x70] sm:$0xff]
  %v366 = vld [vmem:[%s5 + $0x78] sm:$0xff]
  %v367 = vld [vmem:[%s5 + $0x80] sm:$0xff]
  %v368 = vld [vmem:[%s5 + $0x88] sm:$0xff]
  %v369 = vld [vmem:[%s5 + $0x90] sm:$0xff]
  %v370 = vld [vmem:[%s5 + $0x98] sm:$0xff]
  %v371 = vld [vmem:[%s5 + $0xa0] sm:$0xff]
  %v372 = vld [vmem:[%s5 + $0xa8] sm:$0xff]
  %v373 = vld [vmem:[%s5 + $0xb0] sm:$0xff]
  %v374 = vld [vmem:[%s5 + $0xb8] sm:$0xff]
  %v375 = vld [vmem:[%s5 + $0xc0] sm:$0xff]
  %v376 = vld [vmem:[%s5 + $0xc8] sm:$0xff]
  %v377 = vld [vmem:[%s5 + $0xd0] sm:$0xff]
  %v378 = vld [vmem:[%s5 + $0xd8] sm:$0xff]
  %v379 = vld [vmem:[%s5 + $0xe0] sm:$0xff]
  %v380 = vld [vmem:[%s5 + $0xe8] sm:$0xff]
  %v381 = vld [vmem:[%s5 + $0xf0] sm:$0xff]
  %v382 = vld [vmem:[%s5 + $0xf8] sm:$0xff]
  %v383 = vld [vmem:[%s5 + $0x100] sm:$0xff]
  %v384 = vld [vmem:[%s5 + $0x108] sm:$0xff]
  %v385 = vld [vmem:[%s5 + $0x110] sm:$0xff]
  %v386 = vld [vmem:[%s5 + $0x118] sm:$0xff]
  %v387 = vld [vmem:[%s5 + $0x120] sm:$0xff]
  %v388 = vld [vmem:[%s5 + $0x128] sm:$0xff]
  %v389 = vld [vmem:[%s5 + $0x130] sm:$0xff]
  %v390 = vld [vmem:[%s5 + $0x138] sm:$0xff]
  %v391 = vld [vmem:[%s5 + $0x140] sm:$0xff]
  %v392 = vld [vmem:[%s5 + $0x148] sm:$0xff]
  %v393 = vld [vmem:[%s5 + $0x150] sm:$0xff]
  %v394 = vld [vmem:[%s5 + $0x158] sm:$0xff]
  %v395 = vld [vmem:[%s5 + $0x160] sm:$0xff]
  %v396 = vld [vmem:[%s5 + $0x168] sm:$0xff]
  %v397 = vld [vmem:[%s5 + $0x170] sm:$0xff]
  %v398 = vld [vmem:[%s5 + $0x178] sm:$0xff]
  %v399 = vld [vmem:[%s5 + $0x180] sm:$0xff]
  %v400 = vld [vmem:[%s5 + $0x188] sm:$0xff]
  %v401 = vld [vmem:[%s5 + $0x190] sm:$0xff]
  %v402 = vld [vmem:[%s5 + $0x198] sm:$0xff]
  %v403 = vld [vmem:[%s5 + $0x1a0] sm:$0xff]
  %v404 = vld [vmem:[%s5 + $0x1a8] sm:$0xff]
  %v405 = vld [vmem:[%s5 + $0x1b0] sm:$0xff]
  %v406 = vld [vmem:[%s5 + $0x1b8] sm:$0xff]
  %v407 = vld [vmem:[%s5 + $0x1c0] sm:$0xff]
  %v408 = vld [vmem:[%s5 + $0x1c8] sm:$0xff]
  %v409 = vld [vmem:[%s5 + $0x1d0] sm:$0xff]
  %v410 = vld [vmem:[%s5 + $0x1d8] sm:$0xff]
  %v411 = vld [vmem:[%s5 + $0x1e0] sm:$0xff]
  %v412 = vld [vmem:[%s5 + $0x1e8] sm:$0xff]
  %v413 = vld [vmem:[%s5 + $0x1f0] sm:$0xff]
  %v414 = vld [vmem:[%s5 + $0x1f8] sm:$0xff]
  %v415 = vld [vmem:[%s6] sm:$0x1]
  %416 = vmatprep.subr.mxu0 0.0
  %417 = vmatpush1.msra.mxu0 %v351
  %418 = vmatprep.subr.mxu0 0.0
  %419 = vmatpush1.msra.mxu0 %v352
  %420 = vmatprep.subr.mxu0 0.0
  %421 = vmatpush1.msra.mxu0 %v353
  %422 = vmatprep.subr.mxu0 0.0
  %423 = vmatpush1.msra.mxu0 %v354
  %424 = vmatprep.subr.mxu0 0.0
  %425 = vmatpush1.msra.mxu0 %v355
  %426 = vmatprep.subr.mxu0 0.0
  %427 = vmatpush1.msra.mxu0 %v356
  %428 = vmatprep.subr.mxu0 0.0
  %429 = vmatpush1.msra.mxu0 %v357
  %430 = vmatprep.subr.mxu0 0.0
  %431 = vmatpush1.msra.mxu0 %v358
  %432 = vmatprep.subr.mxu0 0.0
  %433 = vmatpush1.msra.mxu0 %v359
  %434 = vmatprep.subr.mxu0 0.0
  %435 = vmatpush1.msra.mxu0 %v360
  %436 = vmatprep.subr.mxu0 0.0
  %437 = vmatpush1.msra.mxu0 %v361
  %438 = vmatprep.subr.mxu0 0.0
  %439 = vmatpush1.msra.mxu0 %v362
  %440 = vmatprep.subr.mxu0 0.0
  %441 = vmatpush1.msra.mxu0 %v363
  %442 = vmatprep.subr.mxu0 0.0
  %443 = vmatpush1.msra.mxu0 %v364
  %444 = vmatprep.subr.mxu0 0.0
  %445 = vmatpush1.msra.mxu0 %v365
  %446 = vmatprep.subr.mxu0 0.0
  %447 = vmatpush1.msra.mxu0 %v366
  %448 = vmatprep.subr.mxu0 0.0
  %449 = vmatpush1.msra.mxu0 %v367
  %450 = vmatprep.subr.mxu0 0.0
  %451 = vmatpush1.msra.mxu0 %v368
  %452 = vmatprep.subr.mxu0 0.0
  %453 = vmatpush1.msra.mxu0 %v369
  %454 = vmatprep.subr.mxu0 0.0
  %455 = vmatpush1.msra.mxu0 %v370
  %456 = vmatprep.subr.mxu0 0.0
  %457 = vmatpush1.msra.mxu0 %v371
  %458 = vmatprep.subr.mxu0 0.0
  %459 = vmatpush1.msra.mxu0 %v372
  %460 = vmatprep.subr.mxu0 0.0
  %461 = vmatpush1.msra.mxu0 %v373
  %462 = vmatprep.subr.mxu0 0.0
  %463 = vmatpush1.msra.mxu0 %v374
  %464 = vmatprep.subr.mxu0 0.0
  %465 = vmatpush1.msra.mxu0 %v375
  %466 = vmatprep.subr.mxu0 0.0
  %467 = vmatpush1.msra.mxu0 %v376
  %468 = vmatprep.subr.mxu0 0.0
  %469 = vmatpush1.msra.mxu0 %v377
  %470 = vmatprep.subr.mxu0 0.0
  %471 = vmatpush1.msra.mxu0 %v378
  %472 = vmatprep.subr.mxu0 0.0
  %473 = vmatpush1.msra.mxu0 %v379
  %474 = vmatprep.subr.mxu0 0.0
  %475 = vmatpush1.msra.mxu0 %v380
  %476 = vmatprep.subr.mxu0 0.0
  %477 = vmatpush1.msra.mxu0 %v381
  %478 = vmatprep.subr.mxu0 0.0
  %479 = vmatpush1.msra.mxu0 %v382
  %480 = vmatprep.mubr.f32.mxu0 %v348
  %481 = vmatmul.mubr.f32.gmra.mrb[0].mxu0 %v347
  %v482 = vpop.f32.mrb[0].mxu0
  %v483 = vadd.f32 %v415, %v482
  %v484 = vpop.f32.mrb[0].mxu0
  %485 = vdwg.mxu0
  %486 = vmatprep.subr.mxu0 0.0
  %487 = vmatpush1.msra.mxu0 %v383
  %488 = vmatprep.subr.mxu0 0.0
  %489 = vmatpush1.msra.mxu0 %v384
  %490 = vmatprep.subr.mxu0 0.0
  %491 = vmatpush1.msra.mxu0 %v385
  %492 = vmatprep.subr.mxu0 0.0
  %493 = vmatpush1.msra.mxu0 %v386
  %494 = vmatprep.subr.mxu0 0.0
  %495 = vmatpush1.msra.mxu0 %v387
  %496 = vmatprep.subr.mxu0 0.0
  %497 = vmatpush1.msra.mxu0 %v388
  %498 = vmatprep.subr.mxu0 0.0
  %499 = vmatpush1.msra.mxu0 %v389
  %500 = vmatprep.subr.mxu0 0.0
  %501 = vmatpush1.msra.mxu0 %v390
  %502 = vmatprep.subr.mxu0 0.0
  %503 = vmatpush1.msra.mxu0 %v391
  %504 = vmatprep.subr.mxu0 0.0
  %505 = vmatpush1.msra.mxu0 %v392
  %506 = vmatprep.subr.mxu0 0.0
  %507 = vmatpush1.msra.mxu0 %v393
  %508 = vmatprep.subr.mxu0 0.0
  %509 = vmatpush1.msra.mxu0 %v394
  %510 = vmatprep.subr.mxu0 0.0
  %511 = vmatpush1.msra.mxu0 %v395
  %512 = vmatprep.subr.mxu0 0.0
  %513 = vmatpush1.msra.mxu0 %v396
  %514 = vmatprep.subr.mxu0 0.0
  %515 = vmatpush1.msra.mxu0 %v397
  %516 = vmatprep.subr.mxu0 0.0
  %517 = vmatpush1.msra.mxu0 %v398
  %518 = vmatprep.subr.mxu0 0.0
  %519 = vmatpush1.msra.mxu0 %v399
  %520 = vmatprep.subr.mxu0 0.0
  %521 = vmatpush1.msra.mxu0 %v400
  %522 = vmatprep.subr.mxu0 0.0
  %523 = vmatpush1.msra.mxu0 %v401
  %524 = vmatprep.subr.mxu0 0.0
  %525 = vmatpush1.msra.mxu0 %v402
  %526 = vmatprep.subr.mxu0 0.0
  %527 = vmatpush1.msra.mxu0 %v403
  %528 = vmatprep.subr.mxu0 0.0
  %529 = vmatpush1.msra.mxu0 %v404
  %530 = vmatprep.subr.mxu0 0.0
  %531 = vmatpush1.msra.mxu0 %v405
  %532 = vmatprep.subr.mxu0 0.0
  %533 = vmatpush1.msra.mxu0 %v406
  %534 = vmatprep.subr.mxu0 0.0
  %535 = vmatpush1.msra.mxu0 %v407
  %536 = vmatprep.subr.mxu0 0.0
  %537 = vmatpush1.msra.mxu0 %v408
  %538 = vmatprep.subr.mxu0 0.0
  %539 = vmatpush1.msra.mxu0 %v409
  %540 = vmatprep.subr.mxu0 0.0
  %541 = vmatpush1.msra.mxu0 %v410
  %542 = vmatprep.subr.mxu0 0.0
  %543 = vmatpush1.msra.mxu0 %v411
  %544 = vmatprep.subr.mxu0 0.0
  %545 = vmatpush1.msra.mxu0 %v412
  %546 = vmatprep.subr.mxu0 0.0
  %547 = vmatpush1.msra.mxu0 %v413
  %548 = vmatprep.subr.mxu0 0.0
  %549 = vmatpush1.msra.mxu0 %v414
  %550 = vmatprep.mubr.f32.mxu0 %v350
  %551 = vmatmul.mubr.f32.gmra.mrb[0].mxu0 %v349
  %v552 = vpop.f32.mrb[0].mxu0
  %v553 = vadd.f32 %v483, %v552
  %v554 = vpop.f32.mrb[0].mxu0
  %555 = vdwg.mxu0
  %556 = vst [vmem:[%s8] sm:$0x1] %v553
  // Predicated region
  $region30: #{daggnn_mlp_decoder.1} parent=0 // pred_check
    _
  $region31: #{daggnn_mlp_decoder.1} parent=0 // pred_check_branch
    %558 = sbr.rel (0) target = $region33
  $region32: #{daggnn_mlp_decoder.1} parent=0 // pred_region
    _
  $region33: #{daggnn_mlp_decoder.1} parent=0 // pred_fallthru
    _
  // Predicated region
  $region34: #{daggnn_mlp_decoder.1} parent=0 // pred_check
    _
  $region35: #{daggnn_mlp_decoder.1} parent=0 // pred_check_branch
    %560 = sbr.rel (0) target = $region37
  $region36: #{daggnn_mlp_decoder.1} parent=0 // pred_region
    _
  $region37: #{daggnn_mlp_decoder.1} parent=0 // pred_fallthru
    _
  // Predicated region
  $region38: #{daggnn_mlp_decoder.1} parent=0 // pred_check
    _
  $region39: #{daggnn_mlp_decoder.1} parent=0 // pred_check_branch
    %562 = sbr.rel (0) target = $region41
  $region40: #{daggnn_mlp_decoder.1} parent=0 // pred_region
    _
  $region41: #{daggnn_mlp_decoder.1} parent=0 // pred_fallthru
    _
  // Predicated region
  $region42: #{daggnn_mlp_decoder.1} parent=0 // pred_check
    _
  $region43: #{daggnn_mlp_decoder.1} parent=0 // pred_check_branch
    %564 = sbr.rel (0) target = $region45
  $region44: #{daggnn_mlp_decoder.1} parent=0 // pred_region
    _
  $region45: #{daggnn_mlp_decoder.1} parent=0 // pred_fallthru
    _

</llo_original>
